<compile_context>
chip_gen: v7x
topology: tpu7x:2x2x1
jax: 0.10.0
libtpu: 0.0.40
codegen_flags: <defaults>
</compile_context>

<pallas_src>
import functools

import jax
import jax.numpy as jnp
from jax.experimental import pallas as pl
from jax.experimental.pallas import tpu as pltpu

# Small, runnable config (same structure as the PyTorch CONFIG, scaled down).
CONFIG = {
    "context_length": 16,
    "emb_dim": 64,
    "n_heads": 4,
    "n_layers": 2,
    "drop_rate": 0.1,   # TODO(synk): dropout treated as identity (inference semantics)
    "qkv_bias": False,
}

_GELU_C = 0.7978845608028654  # sqrt(2/pi)
_VMEM_LIMIT = 32 * 1024 * 1024  # explicit scoped-VMEM limit (safe on v5e/v6e/v7x)


def _round_up(x, m):
    return ((x + m - 1) // m) * m


def _cparams(*sem):
    return pltpu.CompilerParams(dimension_semantics=sem,
                                vmem_limit_bytes=_VMEM_LIMIT)


# ----------------------------- Pallas kernels ------------------------------ #

def _attn_block_kernel(x_ref, g_ref, bt_ref, wqkv_ref, wo_ref, bo_ref, o_ref,
                       *, n_heads, eps):
    """LayerNorm1 + fused QKV + head-batched causal attention + out-proj + residual."""
    x = x_ref[0]                                          # (S, D) f32 residual input
    S, D = x.shape
    H = n_heads
    Dh = D // H

    # LayerNorm (norm1), f32 VPU/EUP math (unbiased=False variance).
    mean = jnp.mean(x, axis=-1, keepdims=True)
    var = jnp.mean(jnp.square(x - mean), axis=-1, keepdims=True)
    h = (g_ref[...] * ((x - mean) * jax.lax.rsqrt(var + eps)) + bt_ref[...])
    h = h.astype(jnp.bfloat16)

    # Fused QKV projection (qkv_bias=False): one bf16 MXU pass -> (S, 3D) f32.
    # (1/sqrt(Dh) is pre-baked into the Q columns of wqkv at init.)
    qkv = jnp.dot(h, wqkv_ref[...], preferred_element_type=jnp.float32)

    # Head-batched operands: (H, S, Dh).
    q = qkv[:, 0 * D:1 * D].reshape(S, H, Dh).swapaxes(0, 1).astype(jnp.bfloat16)
    k = qkv[:, 1 * D:2 * D].reshape(S, H, Dh).swapaxes(0, 1).astype(jnp.bfloat16)
    v = qkv[:, 2 * D:3 * D].reshape(S, H, Dh).swapaxes(0, 1).astype(jnp.bfloat16)

    # Scores over all heads in one batched dot_general: (H, S, S) f32.
    s = jnp.einsum('hqd,hkd->hqk', q, k, preferred_element_type=jnp.float32)

    row = jax.lax.broadcasted_iota(jnp.int32, (S, S), 0)
    col = jax.lax.broadcasted_iota(jnp.int32, (S, S), 1)
    s = jnp.where((col > row)[None, :, :], -1e30, s)       # finite mask (flash-safe)

    s = s - jnp.max(s, axis=-1, keepdims=True)
    p = jnp.exp(s)
    p = p * pl.reciprocal(jnp.sum(p, axis=-1, keepdims=True), approx=True)
    # TODO(synk): attention-weight dropout is identity (eval semantics).

    # Context for all heads: (H, S, Dh) -> lane-dense (S, D).
    ctx = jnp.einsum('hqk,hkd->hqd', p.astype(jnp.bfloat16), v,
                     preferred_element_type=jnp.float32)
    ctx = ctx.swapaxes(0, 1).reshape(S, D).astype(jnp.bfloat16)

    # Single concatenated out-projection (K=D) + bias + residual.
    out = jnp.dot(ctx, wo_ref[...], preferred_element_type=jnp.float32)
    o_ref[0] = (x + out + bo_ref[...]).astype(o_ref.dtype)


def attention_block(x, ln_g, ln_b, wqkv, wo, bo, n_heads, eps=1e-5):
    """x: (B, S, D) -> (B, S, D). One program per batch element."""
    B, S, D = x.shape
    kern = functools.partial(_attn_block_kernel, n_heads=n_heads, eps=eps)
    # TODO(synk): at realistic S (e.g. 256+) tile this flash-style over
    # (batch, head, q-tile) with an 'arbitrary' kv axis + online-softmax scratch
    # so the (S,S) scores / (S,3D) QKV never blow v7x's 64 MiB VMEM, and to give
    # the pipeline / 2 TensorCores more grid steps than grid=(B,).
    return pl.pallas_call(
        kern,
        out_shape=jax.ShapeDtypeStruct((B, S, D), x.dtype),
        grid=(B,),
        in_specs=[
            pl.BlockSpec((1, S, D), lambda b: (b, 0, 0)),
            pl.BlockSpec((1, D), lambda b: (0, 0)),
            pl.BlockSpec((1, D), lambda b: (0, 0)),
            # TODO(synk): constant-index weight blocks could use
            # pipeline_mode=pl.Buffered(1) to reclaim double-buffer VMEM on v7x.
            pl.BlockSpec((D, 3 * D), lambda b: (0, 0)),
            pl.BlockSpec((D, D), lambda b: (0, 0)),
            pl.BlockSpec((1, D), lambda b: (0, 0)),
        ],
        out_specs=pl.BlockSpec((1, S, D), lambda b: (b, 0, 0)),
        compiler_params=_cparams("parallel"),
    )(x, ln_g.reshape(1, D), ln_b.reshape(1, D), wqkv, wo, bo.reshape(1, D))


def _ln_ffn2_kernel(x_ref, g2_ref, b2_ref, g3_ref, b3_ref,
                    w1_ref, b1_ref, w2_ref, b2b_ref, o_ref, *, eps):
    """(LN2 + FFN + residual) then (LN3 + SAME FFN + residual) on one row tile.

    The bf16 w1/w2 blocks stay resident in VMEM and are reused by both passes,
    halving the FFN weight DMA per layer versus two separate kernels.
    """
    w1 = w1_ref[...]            # (D, DH) bf16
    w2 = w2_ref[...]            # (DH, D) bf16
    b1 = b1_ref[...]            # (1, DH) f32
    b2 = b2b_ref[...]           # (1, D)  f32

    def ln_ffn(x, g, b):
        mean = jnp.mean(x, axis=-1, keepdims=True)
        var = jnp.mean(jnp.square(x - mean), axis=-1, keepdims=True)
        h = (g * ((x - mean) * jax.lax.rsqrt(var + eps)) + b).astype(jnp.bfloat16)
        h1 = jnp.dot(h, w1, preferred_element_type=jnp.float32) + b1
        # tanh-approx GELU, matching the reference GELU module (f32 math).
        h1 = 0.5 * h1 * (1.0 + jnp.tanh(_GELU_C * (h1 + 0.044715 * h1 * h1 * h1)))
        o = jnp.dot(h1.astype(jnp.bfloat16), w2, preferred_element_type=jnp.float32) + b2
        return x + o

    x = x_ref[...]                                 # (tm, D) f32
    x = ln_ffn(x, g2_ref[...], b2_ref[...])        # norm2 + FeedForward + residual
    x = ln_ffn(x, g3_ref[...], b3_ref[...])        # norm3 + same FeedForward + residual
    o_ref[...] = x.astype(o_ref.dtype)


def ln_ffn2_residual(x2d, g2, b2, g3, b3, w1, b1, w2, b2b, eps=1e-5):
    """x2d: (M, D) -> (M, D). Row-tiled grid (padded to a tile multiple)."""
    M, D = x2d.shape
    DH = w1.shape[1]
    tm = min(256, _round_up(M, 8))
    Mp = _round_up(M, tm)
    xp = jnp.pad(x2d, ((0, Mp - M), (0, 0))) if Mp != M else x2d
    kern = functools.partial(_ln_ffn2_kernel, eps=eps)
    # TODO(synk): at real D (e.g. 2048, DH=8192) also K-tile the 4*D hidden dim
    # with a reduction grid axis + f32 accumulator scratch so bf16 w1/w2 fit
    # v7x's 64 MiB VMEM with pipelining headroom.
    out = pl.pallas_call(
        kern,
        out_shape=jax.ShapeDtypeStruct((Mp, D), x2d.dtype),
        grid=(Mp // tm,),
        in_specs=[
            pl.BlockSpec((tm, D), lambda i: (i, 0)),
            pl.BlockSpec((1, D), lambda i: (0, 0)),
            pl.BlockSpec((1, D), lambda i: (0, 0)),
            pl.BlockSpec((1, D), lambda i: (0, 0)),
            pl.BlockSpec((1, D), lambda i: (0, 0)),
            pl.BlockSpec((D, DH), lambda i: (0, 0)),
            pl.BlockSpec((1, DH), lambda i: (0, 0)),
            pl.BlockSpec((DH, D), lambda i: (0, 0)),
            pl.BlockSpec((1, D), lambda i: (0, 0)),
        ],
        out_specs=pl.BlockSpec((tm, D), lambda i: (i, 0)),
        compiler_params=_cparams("parallel"),
    )(xp, g2.reshape(1, D), b2.reshape(1, D), g3.reshape(1, D), b3.reshape(1, D),
      w1, b1.reshape(1, DH), w2, b2b.reshape(1, D))
    return out[:M] if Mp != M else out


def _final_ln_lm_head_kernel(x_ref, g_ref, b_ref, w_ref, o_ref, h_ref, *, eps):
    """Final LayerNorm (computed once per row tile) + LM-head matmul per vocab tile."""
    @pl.when(pl.program_id(1) == 0)
    def _():
        x = x_ref[...]
        mean = jnp.mean(x, axis=-1, keepdims=True)
        var = jnp.mean(jnp.square(x - mean), axis=-1, keepdims=True)
        h = g_ref[...] * ((x - mean) * jax.lax.rsqrt(var + eps)) + b_ref[...]
        h_ref[...] = h.astype(jnp.bfloat16)
    o_ref[...] = jnp.dot(h_ref[...], w_ref[...],
                         preferred_element_type=jnp.float32).astype(o_ref.dtype)


def final_ln_lm_head(x2d, ln_g, ln_b, w, eps=1e-5):
    """x2d: (M, D), w: (D, V) bf16 -> (M, V). Tiled over rows ('parallel') and
    vocab (inner 'arbitrary' axis, lane-dense 128/512-aligned tiles)."""
    M, D = x2d.shape
    V = w.shape[1]
    tm = min(256, _round_up(M, 8))
    Mp = _round_up(M, tm)
    tn = min(512, _round_up(V, 128))   # 256-multiple preferred for v6e/v7x MXUs
    Vp = _round_up(V, tn)
    xp = jnp.pad(x2d, ((0, Mp - M), (0, 0))) if Mp != M else x2d
    wp = jnp.pad(w, ((0, 0), (0, Vp - V))) if Vp != V else w
    kern = functools.partial(_final_ln_lm_head_kernel, eps=eps)
    out = pl.pallas_call(
        kern,
        out_shape=jax.ShapeDtypeStruct((Mp, Vp), x2d.dtype),
        grid=(Mp // tm, Vp // tn),
        in_specs=[
            pl.BlockSpec((tm, D), lambda i, j: (i, 0)),
            pl.BlockSpec((1, D), lambda i, j: (0, 0)),
            pl.BlockSpec((1, D), lambda i, j: (0, 0)),
            pl.BlockSpec((D, tn), lambda i, j: (0, j)),
        ],
        out_specs=pl.BlockSpec((tm, tn), lambda i, j: (i, j)),
        scratch_shapes=[pltpu.VMEM((tm, D), jnp.bfloat16)],
        compiler_params=_cparams("parallel", "arbitrary"),
    )(xp, ln_g.reshape(1, D), ln_b.reshape(1, D), wp)
    return out[:M, :V]


# --------------------------- Model (JAX glue) ------------------------------ #

def transformer_block(x, p, cfg):
    B, S, D = x.shape
    # norm1 + attention + residual (fused; all heads, head-batched, per batch elem).
    x = attention_block(x, p["ln1_g"], p["ln1_b"], p["wqkv"], p["wo"], p["bo"],
                        cfg["n_heads"])
    xf = x.reshape(B * S, D)
    # norm2 + FeedForward + residual and norm3 + SAME FeedForward + residual,
    # fused into one kernel (weights DMA'd once) - matches the reference module.
    xf = ln_ffn2_residual(xf, p["ln2_g"], p["ln2_b"], p["ln3_g"], p["ln3_b"],
                          p["w1"], p["b1"], p["w2"], p["b2"])
    return xf.reshape(B, S, D)


def gpt_forward(params, tokens, cfg):
    B, S = tokens.shape
    D = cfg["emb_dim"]
    # TODO(synk): data-dependent token-embedding gather left to XLA (jnp.take).
    tok = jnp.take(params["tok_emb"], tokens, axis=0)            # (B, S, D)
    # Reference: posEmbedding = Embedding(emb_dim, emb_dim) indexed with arange(S)
    # (requires S <= emb_dim, as in the reference).
    pos = params["pos_emb"][:S]                                  # (S, D)
    x = tok + pos[None, :, :]
    # dropEmbedding: identity (eval mode)
    for blk in params["blocks"]:
        x = transformer_block(x, blk, cfg)
    V = params["out_head"].shape[1]
    logits = final_ln_lm_head(x.reshape(B * S, D),
                              params["final_ln_g"], params["final_ln_b"],
                              params["out_head"])
    return logits.reshape(B, S, V)


def init_params(key, vocab_size, cfg):
    D = cfg["emb_dim"]
    H = cfg["n_heads"]
    Dh = D // H
    scale = 1.0 / (Dh ** 0.5)
    L = cfg["n_layers"]
    keys = jax.random.split(key, 3 + L)

    def dense(k, fan_in, fan_out):
        # Stored as (in, out); kernels compute x @ W (equivalent to torch x @ W.T).
        return jax.random.normal(k, (fan_in, fan_out), jnp.float32) * 0.02

    params = {
        "tok_emb": jax.random.normal(keys[0], (vocab_size, D), jnp.float32) * 0.02,
        # Reference: posEmbedding = Embedding(emb_dim, emb_dim)
        "pos_emb": jax.random.normal(keys[1], (D, D), jnp.float32) * 0.02,
        "final_ln_g": jnp.ones((D,), jnp.float32),
        "final_ln_b": jnp.zeros((D,), jnp.float32),
        # bf16 weights: MXUs are bf16-native; halves weight DMA + VMEM.
        "out_head": dense(keys[2], D, vocab_size).astype(jnp.bfloat16),
        "blocks": [],
    }
    for i in range(L):
        bk = jax.random.split(keys[3 + i], 6)
        # Fused [Wq*scale | Wk | Wv]: the 1/sqrt(Dh) attention scale is baked
        # into the Q columns so the kernel never scales the (S,S) score matrix.
        wq = dense(bk[0], D, D) * scale
        wk = dense(bk[1], D, D)
        wv = dense(bk[2], D, D)
        params["blocks"].append({
            "ln1_g": jnp.ones((D,), jnp.float32), "ln1_b": jnp.zeros((D,), jnp.float32),
            "ln2_g": jnp.ones((D,), jnp.float32), "ln2_b": jnp.zeros((D,), jnp.float32),
            "ln3_g": jnp.ones((D,), jnp.float32), "ln3_b": jnp.zeros((D,), jnp.float32),
            "wqkv": jnp.concatenate([wq, wk, wv], axis=1).astype(jnp.bfloat16),
            "wo": dense(bk[3], D, D).astype(jnp.bfloat16),
            "bo": jnp.zeros((D,), jnp.float32),
            "w1": dense(bk[4], D, 4 * D).astype(jnp.bfloat16),
            "b1": jnp.zeros((4 * D,), jnp.float32),
            "w2": dense(bk[5], 4 * D, D).astype(jnp.bfloat16),
            "b2": jnp.zeros((D,), jnp.float32),
        })
    return params


if __name__ == "__main__":
    key = jax.random.PRNGKey(0)
    vocab_size = 32
    B, S = 2, 8
    pkey, tkey = jax.random.split(key)
    params = init_params(pkey, vocab_size, CONFIG)
    tokens = jax.random.randint(tkey, (B, S), 0, vocab_size, dtype=jnp.int32)

    logits = gpt_forward(params, tokens, CONFIG)
    jax.block_until_ready(logits)
    assert logits.shape == (B, S, vocab_size)
    assert bool(jnp.all(jnp.isfinite(logits)))
    print("KERNEL_OK")
</pallas_src>

<mosaic_0001>
module attributes {stable_mosaic.version = 11 : i64} {
  func.func @_attn_block_kernel(%arg0: i32, %arg1: memref<1x8x64xf32, #tpu.memory_space<vmem>>, %arg2: memref<1x64xf32, #tpu.memory_space<vmem>>, %arg3: memref<1x64xf32, #tpu.memory_space<vmem>>, %arg4: memref<64x192xbf16, #tpu.memory_space<vmem>>, %arg5: memref<64x64xbf16, #tpu.memory_space<vmem>>, %arg6: memref<1x64xf32, #tpu.memory_space<vmem>>, %arg7: memref<1x8x64xf32, #tpu.memory_space<vmem>>) attributes {dimension_semantics = [#tpu.dimension_semantics<parallel>], iteration_bounds = array<i64: 2>, scalar_prefetch = 0 : i64, scratch_operands = 0 : i64, tpu.core_type = #tpu.core_type<tc>, window_params = [{transform_indices = @transform_0, window_bounds = array<i64: 1, 8, 64>}, {pipeline_mode = #tpu.pipeline_mode<synchronous>, transform_indices = @transform_1, window_bounds = array<i64: 1, 64>}, {pipeline_mode = #tpu.pipeline_mode<synchronous>, transform_indices = @transform_2, window_bounds = array<i64: 1, 64>}, {pipeline_mode = #tpu.pipeline_mode<synchronous>, transform_indices = @transform_3, window_bounds = array<i64: 64, 192>}, {pipeline_mode = #tpu.pipeline_mode<synchronous>, transform_indices = @transform_4, window_bounds = array<i64: 64, 64>}, {pipeline_mode = #tpu.pipeline_mode<synchronous>, transform_indices = @transform_5, window_bounds = array<i64: 1, 64>}, {transform_indices = @transform_6, window_bounds = array<i64: 1, 8, 64>}]} {
    %c0 = arith.constant 0 : index
    %c0_0 = arith.constant 0 : index
    %c0_1 = arith.constant 0 : index
    %0 = vector.load %arg1[%c0, %c0_0, %c0_1] : memref<1x8x64xf32, #tpu.memory_space<vmem>>, vector<1x8x64xf32>
    %1 = vector.shape_cast %0 : vector<1x8x64xf32> to vector<8x64xf32>
    %cst = arith.constant dense<0.000000e+00> : vector<8xf32>
    %2 = vector.multi_reduction <add>, %1, %cst [1] : vector<8x64xf32> to vector<8xf32>
    %3 = vector.shape_cast %2 : vector<8xf32> to vector<8x1xf32>
    %cst_2 = arith.constant 6.400000e+01 : f32
    %4 = vector.broadcast %cst_2 : f32 to vector<8x1xf32>
    %5 = arith.divf %3, %4 : vector<8x1xf32>
    %6 = vector.broadcast %5 : vector<8x1xf32> to vector<8x64xf32>
    %7 = arith.subf %1, %6 : vector<8x64xf32>
    %8 = arith.mulf %7, %7 : vector<8x64xf32>
    %cst_3 = arith.constant dense<0.000000e+00> : vector<8xf32>
    %9 = vector.multi_reduction <add>, %8, %cst_3 [1] : vector<8x64xf32> to vector<8xf32>
    %10 = vector.shape_cast %9 : vector<8xf32> to vector<8x1xf32>
    %cst_4 = arith.constant 6.400000e+01 : f32
    %11 = vector.broadcast %cst_4 : f32 to vector<8x1xf32>
    %12 = arith.divf %10, %11 : vector<8x1xf32>
    %c0_5 = arith.constant 0 : index
    %c0_6 = arith.constant 0 : index
    %13 = vector.load %arg2[%c0_5, %c0_6] : memref<1x64xf32, #tpu.memory_space<vmem>>, vector<1x64xf32>
    %14 = vector.broadcast %5 : vector<8x1xf32> to vector<8x64xf32>
    %15 = arith.subf %1, %14 : vector<8x64xf32>
    %cst_7 = arith.constant 9.99999974E-6 : f32
    %16 = vector.broadcast %cst_7 : f32 to vector<8x1xf32>
    %17 = arith.addf %12, %16 : vector<8x1xf32>
    %18 = math.rsqrt %17 : vector<8x1xf32>
    %19 = vector.broadcast %18 : vector<8x1xf32> to vector<8x64xf32>
    %20 = arith.mulf %15, %19 : vector<8x64xf32>
    %21 = vector.broadcast %13 : vector<1x64xf32> to vector<8x64xf32>
    %22 = arith.mulf %21, %20 : vector<8x64xf32>
    %c0_8 = arith.constant 0 : index
    %c0_9 = arith.constant 0 : index
    %23 = vector.load %arg3[%c0_8, %c0_9] : memref<1x64xf32, #tpu.memory_space<vmem>>, vector<1x64xf32>
    %24 = vector.broadcast %23 : vector<1x64xf32> to vector<8x64xf32>
    %25 = arith.addf %22, %24 : vector<8x64xf32>
    %26 = arith.truncf %25 : vector<8x64xf32> to vector<8x64xbf16>
    %c0_10 = arith.constant 0 : index
    %c0_11 = arith.constant 0 : index
    %27 = vector.load %arg4[%c0_10, %c0_11] : memref<64x192xbf16, #tpu.memory_space<vmem>>, vector<64x192xbf16>
    %cst_12 = arith.constant dense<0.000000e+00> : vector<8x192xf32>
    %28 = tpu.matmul %26, %27, %cst_12 {dimension_numbers = #tpu.dot_dimension_numbers<[1], [0], [0], [1], [0, 0, 1, 1], [], []>} : vector<8x64xbf16>, vector<64x192xbf16>, vector<8x192xf32> -> vector<8x192xf32>
    %29 = vector.extract_strided_slice %28 {offsets = [0, 0], sizes = [8, 64], strides = [1, 1]} : vector<8x192xf32> to vector<8x64xf32>
    %30 = vector.shape_cast %29 : vector<8x64xf32> to vector<8x4x16xf32>
    %31 = tpu.transpose %30, [1, 0, 2] : vector<8x4x16xf32> -> vector<4x8x16xf32>
    %32 = arith.truncf %31 : vector<4x8x16xf32> to vector<4x8x16xbf16>
    %33 = vector.extract_strided_slice %28 {offsets = [0, 64], sizes = [8, 64], strides = [1, 1]} : vector<8x192xf32> to vector<8x64xf32>
    %34 = vector.shape_cast %33 : vector<8x64xf32> to vector<8x4x16xf32>
    %35 = tpu.transpose %34, [1, 0, 2] : vector<8x4x16xf32> -> vector<4x8x16xf32>
    %36 = arith.truncf %35 : vector<4x8x16xf32> to vector<4x8x16xbf16>
    %37 = vector.extract_strided_slice %28 {offsets = [0, 128], sizes = [8, 64], strides = [1, 1]} : vector<8x192xf32> to vector<8x64xf32>
    %38 = vector.shape_cast %37 : vector<8x64xf32> to vector<8x4x16xf32>
    %39 = tpu.transpose %38, [1, 0, 2] : vector<8x4x16xf32> -> vector<4x8x16xf32>
    %40 = arith.truncf %39 : vector<4x8x16xf32> to vector<4x8x16xbf16>
    "tpu.trace_start"() <{level = 10 : i32, message = "hqd,hkd->hqk"}> : () -> ()
    %cst_13 = arith.constant dense<0.000000e+00> : vector<4x8x8xf32>
    %41 = tpu.matmul %32, %36, %cst_13 {dimension_numbers = #tpu.dot_dimension_numbers<[2], [2], [1], [1], [0, 0, 0, 1, 1, 1], [0], [0]>} : vector<4x8x16xbf16>, vector<4x8x16xbf16>, vector<4x8x8xf32> -> vector<4x8x8xf32>
    "tpu.trace_stop"() : () -> ()
    %42 = tpu.iota {dimensions = array<i32: 0>} : vector<8x8xi32>
    %43 = tpu.iota {dimensions = array<i32: 1>} : vector<8x8xi32>
    %44 = arith.cmpi sgt, %43, %42 : vector<8x8xi32>
    %45 = vector.shape_cast %44 : vector<8x8xi1> to vector<1x8x8xi1>
    %cst_14 = arith.constant -1.000000e+30 : f32
    %46 = vector.shape_cast %45 : vector<1x8x8xi1> to vector<1x8x8xi1>
    %47 = vector.broadcast %46 : vector<1x8x8xi1> to vector<4x8x8xi1>
    %48 = vector.broadcast %cst_14 : f32 to vector<4x8x8xf32>
    %49 = arith.select %47, %48, %41 : vector<4x8x8xi1>, vector<4x8x8xf32>
    %cst_15 = arith.constant dense<0xFF800000> : vector<4x8xf32>
    %50 = vector.multi_reduction <maximumf>, %49, %cst_15 [2] : vector<4x8x8xf32> to vector<4x8xf32>
    %51 = vector.shape_cast %50 : vector<4x8xf32> to vector<4x8x1xf32>
    %52 = vector.broadcast %51 : vector<4x8x1xf32> to vector<4x8x8xf32>
    %53 = arith.subf %49, %52 : vector<4x8x8xf32>
    %54 = math.exp %53 : vector<4x8x8xf32>
    %cst_16 = arith.constant dense<0.000000e+00> : vector<4x8xf32>
    %55 = vector.multi_reduction <add>, %54, %cst_16 [2] : vector<4x8x8xf32> to vector<4x8xf32>
    %56 = vector.shape_cast %55 : vector<4x8xf32> to vector<4x8x1xf32>
    %57 = tpu.reciprocal %56 {approx = true} : vector<4x8x1xf32> -> vector<4x8x1xf32>
    %58 = vector.broadcast %57 : vector<4x8x1xf32> to vector<4x8x8xf32>
    %59 = arith.mulf %54, %58 : vector<4x8x8xf32>
    %60 = arith.truncf %59 : vector<4x8x8xf32> to vector<4x8x8xbf16>
    "tpu.trace_start"() <{level = 10 : i32, message = "hqk,hkd->hqd"}> : () -> ()
    %cst_17 = arith.constant dense<0.000000e+00> : vector<4x8x16xf32>
    %61 = tpu.matmul %60, %40, %cst_17 {dimension_numbers = #tpu.dot_dimension_numbers<[2], [1], [1], [2], [0, 0, 0, 1, 1, 2], [0], [0]>} : vector<4x8x8xbf16>, vector<4x8x16xbf16>, vector<4x8x16xf32> -> vector<4x8x16xf32>
    "tpu.trace_stop"() : () -> ()
    %62 = tpu.transpose %61, [1, 0, 2] : vector<4x8x16xf32> -> vector<8x4x16xf32>
    %63 = vector.shape_cast %62 : vector<8x4x16xf32> to vector<8x64xf32>
    %64 = arith.truncf %63 : vector<8x64xf32> to vector<8x64xbf16>
    %c0_18 = arith.constant 0 : index
    %c0_19 = arith.constant 0 : index
    %65 = vector.load %arg5[%c0_18, %c0_19] : memref<64x64xbf16, #tpu.memory_space<vmem>>, vector<64x64xbf16>
    %cst_20 = arith.constant dense<0.000000e+00> : vector<8x64xf32>
    %66 = tpu.matmul %64, %65, %cst_20 {dimension_numbers = #tpu.dot_dimension_numbers<[1], [0], [0], [1], [0, 0, 1, 1], [], []>} : vector<8x64xbf16>, vector<64x64xbf16>, vector<8x64xf32> -> vector<8x64xf32>
    %67 = arith.addf %1, %66 : vector<8x64xf32>
    %c0_21 = arith.constant 0 : index
    %c0_22 = arith.constant 0 : index
    %68 = vector.load %arg6[%c0_21, %c0_22] : memref<1x64xf32, #tpu.memory_space<vmem>>, vector<1x64xf32>
    %69 = vector.broadcast %68 : vector<1x64xf32> to vector<8x64xf32>
    %70 = arith.addf %67, %69 : vector<8x64xf32>
    %c0_23 = arith.constant 0 : index
    %c0_24 = arith.constant 0 : index
    %c0_25 = arith.constant 0 : index
    %71 = vector.load %arg7[%c0_23, %c0_24, %c0_25] : memref<1x8x64xf32, #tpu.memory_space<vmem>>, vector<1x8x64xf32>
    %72 = vector.shape_cast %71 : vector<1x8x64xf32> to vector<8x64xf32>
    %73 = vector.shape_cast %70 : vector<8x64xf32> to vector<1x8x64xf32>
    tpu.vector_store %arg7[%c0_23, %c0_24, %c0_25], %73 {strides = array<i32>} : memref<1x8x64xf32, #tpu.memory_space<vmem>>, vector<1x8x64xf32>,
    return
  }
  func.func @transform_0(%arg0: i32) -> (i32, i32, i32) {
    %c0_i32 = arith.constant 0 : i32
    %c0_i32_0 = arith.constant 0 : i32
    %c0_i32_1 = arith.constant 0 : i32
    return %arg0, %c0_i32, %c0_i32_0 : i32, i32, i32
  }
  func.func @transform_1(%arg0: i32) -> (i32, i32) {
    %c0_i32 = arith.constant 0 : i32
    %c0_i32_0 = arith.constant 0 : i32
    %c0_i32_1 = arith.constant 0 : i32
    return %c0_i32, %c0_i32_0 : i32, i32
  }
  func.func @transform_2(%arg0: i32) -> (i32, i32) {
    %c0_i32 = arith.constant 0 : i32
    %c0_i32_0 = arith.constant 0 : i32
    %c0_i32_1 = arith.constant 0 : i32
    return %c0_i32, %c0_i32_0 : i32, i32
  }
  func.func @transform_3(%arg0: i32) -> (i32, i32) {
    %c0_i32 = arith.constant 0 : i32
    %c0_i32_0 = arith.constant 0 : i32
    %c0_i32_1 = arith.constant 0 : i32
    return %c0_i32, %c0_i32_0 : i32, i32
  }
  func.func @transform_4(%arg0: i32) -> (i32, i32) {
    %c0_i32 = arith.constant 0 : i32
    %c0_i32_0 = arith.constant 0 : i32
    %c0_i32_1 = arith.constant 0 : i32
    return %c0_i32, %c0_i32_0 : i32, i32
  }
  func.func @transform_5(%arg0: i32) -> (i32, i32) {
    %c0_i32 = arith.constant 0 : i32
    %c0_i32_0 = arith.constant 0 : i32
    %c0_i32_1 = arith.constant 0 : i32
    return %c0_i32, %c0_i32_0 : i32, i32
  }
  func.func @transform_6(%arg0: i32) -> (i32, i32, i32) {
    %c0_i32 = arith.constant 0 : i32
    %c0_i32_0 = arith.constant 0 : i32
    %c0_i32_1 = arith.constant 0 : i32
    return %arg0, %c0_i32, %c0_i32_0 : i32, i32, i32
  }
}

</mosaic_0001>

<llo_original>
// kernel: tpu_custom_call.1
$region0: #{tpu_custom_call.1}
  #allocation0 [shape = 'u32[]', space=smem, size = 0x4, offset = 0x4, fixed_abs, tag = 'smem constant byte address 0x4 - core index']
  #allocation1 [shape = 'u32[144,128]{1,0:T(1,128)}', space=vmem, size = 0x12000, scoped, tag = 'internal scratch']
  %s0 = inlined_call_operand.hbm [shape: f32[2,8,64], index: 0, kind: input, shape index: {}]
  %s1 = inlined_call_operand.vmem [shape: f32[1,64], index: 1, kind: input, shape index: {}]
  %s2 = inlined_call_operand.vmem [shape: f32[1,64], index: 2, kind: input, shape index: {}]
  %s3 = inlined_call_operand.hbm [shape: bf16[64,192], index: 3, kind: input, shape index: {}]
  %s4 = inlined_call_operand.hbm [shape: bf16[64,64], index: 4, kind: input, shape index: {}]
  %s5 = inlined_call_operand.vmem [shape: f32[1,64], index: 5, kind: input, shape index: {}]
  %s6 = inlined_call_operand.hbm [shape: f32[2,8,64], index: 6, kind: output, shape index: {}]
  %s7 = sld [smem:[#allocation0]]
  $region69: #{tpu_custom_call.1} parent=0
    _
  %s9 = ssub.s32 1, %s7
  %s10 = scalar_select 0, %s9, %s7
  $region1: #{tpu_custom_call.1} parent=0
    #allocation2 [shape = 'u8[8192]{0}', space=vmem, size = 0x2000, scoped, tag = 'input window, operand 0']
    #allocation3 [shape = 's32[2]{0}', space=sflag, size = 0x8, scoped, tag = 'scoped memory for tpu_custom_call.1']
    #allocation4 [shape = 's32[2]{0}', space=sflag, size = 0x8, scoped, tag = 'scoped memory for tpu_custom_call.1']
    #allocation5 [shape = 'u8[32768]{0}', space=vmem, size = 0x8000, scoped, tag = 'input window, operand 3, single buffered']
    #allocation6 [shape = 's32[1]{0}', space=sflag, size = 0x4, scoped, tag = 'scoped memory for tpu_custom_call.1']
    #allocation7 [shape = 'u8[16384]{0}', space=vmem, size = 0x4000, scoped, tag = 'input window, operand 4, single buffered']
    #allocation8 [shape = 'u8[8192]{0}', space=vmem, size = 0x2000, scoped, tag = 'output window, operand 0']
    %11 = vsyncpa [#allocation3], 0
    %s12 = scalar_lea.sflag [#allocation3], 1
    %13 = vsyncpa %s12, 0
    %14 = vsyncpa [#allocation6], 0
    %15 = vsyncpa [#allocation4], 0
    %s16 = scalar_lea.sflag [#allocation4], 1
    %17 = vsyncpa %s16, 0
    loop: start=0, step=1, limit=4
    $region2: #{tpu_custom_call.1} parent=1 // loop_pre_header
      _
    $region3: #{tpu_custom_call.1} parent=1 // loop_header
      %s19 = sphi 0, %s23
      %p20 = scmp.ge.s32.totalorder %s19, 4
      %s29 = sphi 0, %s31
      %s32 = sphi 0, %s29
      %s33 = sphi 0, %s32
      %s49 = sphi 0, %s33
      %s53 = sphi 0, %s53
      %s55 = sphi 0, %s53
      %s56 = sphi 0, %s55
      %s70 = sphi 0, %s56
      %s74 = sphi 0, %s74
      %s76 = sphi 0, %s74
      %s77 = sphi 0, %s76
      %s91 = sphi 0, %s77
      %s95 = sphi 0, %s95
      %s97 = sphi 0, %s95
      %s98 = sphi 0, %s97
      %s112 = sphi 0, %s98
      %s116 = sphi 0, %s116
      %s118 = sphi 0, %s116
      %s119 = sphi 0, %s118
      %s133 = sphi 0, %s119
      %s137 = sphi 0, %s137
      %s139 = sphi 0, %s137
      %s140 = sphi 0, %s139
      %s154 = sphi 0, %s140
      %s160 = sphi 0, %s162
      %s163 = sphi 0, %s160
      %s164 = sphi 0, %s163
      %s180 = sphi 0, %s164
    $region4: #{tpu_custom_call.1} parent=1 // loop_header_branch
      %22 = sbr.rel (%p20) target = $region8
    $region5: #{tpu_custom_call.1} parent=1 // loop_body
      %s24 = ssub.s32 %s19, 1
      %s25 = ssub.s32 %s19, 2
      %s26 = sadd.s32 %s19, 1
      %s27 = ssub.s32 %s19, %s26
      %p28 = scmp.eq.s32.totalorder %s27, 0
      %s30 = sadd.s32 %s29, 1
      %s31 = scalar_select %p28, %s29, %s30
      %p34 = pneg %p28
      %p35 = scmp.eq.s32.totalorder %s19, 1
      %p36 = por %p34, %p35
      %p37 = scmp.ne.s32.totalorder %s29, %s32
      %p38 = scmp.eq.s32.totalorder %s19, 0
      %p39 = por %p37, %p38
      %p40 = scmp.ne.s32.totalorder %s29, %s32
      %p41 = scmp.eq.s32.totalorder %s24, 1
      %p42 = por %p40, %p41
      %p43 = scmp.ne.s32.totalorder %s32, %s33
      %p44 = scmp.eq.s32.totalorder %s24, 0
      %p45 = por %p43, %p44
      %p46 = scmp.ne.s32.totalorder %s32, %s33
      %p47 = scmp.eq.s32.totalorder %s25, 1
      %p48 = por %p46, %p47
      %p50 = scmp.ne.s32.totalorder %s33, %s49
      %p51 = scmp.eq.s32.totalorder %s25, 0
      %p52 = por %p50, %p51
      %s54 = sadd.s32 %s53, 1
      %p57 = scmp.eq.s32.totalorder %s19, 1
      %p58 = scmp.ne.s32.totalorder %s53, %s55
      %p59 = scmp.eq.s32.totalorder %s19, 0
      %p60 = por %p58, %p59
      %p61 = scmp.ne.s32.totalorder %s53, %s55
      %p62 = scmp.eq.s32.totalorder %s24, 1
      %p63 = por %p61, %p62
      %p64 = scmp.ne.s32.totalorder %s55, %s56
      %p65 = scmp.eq.s32.totalorder %s24, 0
      %p66 = por %p64, %p65
      %p67 = scmp.ne.s32.totalorder %s55, %s56
      %p68 = scmp.eq.s32.totalorder %s25, 1
      %p69 = por %p67, %p68
      %p71 = scmp.ne.s32.totalorder %s56, %s70
      %p72 = scmp.eq.s32.totalorder %s25, 0
      %p73 = por %p71, %p72
      %s75 = sadd.s32 %s74, 1
      %p78 = scmp.eq.s32.totalorder %s19, 1
      %p79 = scmp.ne.s32.totalorder %s74, %s76
      %p80 = scmp.eq.s32.totalorder %s19, 0
      %p81 = por %p79, %p80
      %p82 = scmp.ne.s32.totalorder %s74, %s76
      %p83 = scmp.eq.s32.totalorder %s24, 1
      %p84 = por %p82, %p83
      %p85 = scmp.ne.s32.totalorder %s76, %s77
      %p86 = scmp.eq.s32.totalorder %s24, 0
      %p87 = por %p85, %p86
      %p88 = scmp.ne.s32.totalorder %s76, %s77
      %p89 = scmp.eq.s32.totalorder %s25, 1
      %p90 = por %p88, %p89
      %p92 = scmp.ne.s32.totalorder %s77, %s91
      %p93 = scmp.eq.s32.totalorder %s25, 0
      %p94 = por %p92, %p93
      %s96 = sadd.s32 %s95, 1
      %p99 = scmp.eq.s32.totalorder %s19, 1
      %p100 = scmp.ne.s32.totalorder %s95, %s97
      %p101 = scmp.eq.s32.totalorder %s19, 0
      %p102 = por %p100, %p101
      %p103 = scmp.ne.s32.totalorder %s95, %s97
      %p104 = scmp.eq.s32.totalorder %s24, 1
      %p105 = por %p103, %p104
      %p106 = scmp.ne.s32.totalorder %s97, %s98
      %p107 = scmp.eq.s32.totalorder %s24, 0
      %p108 = por %p106, %p107
      %p109 = scmp.ne.s32.totalorder %s97, %s98
      %p110 = scmp.eq.s32.totalorder %s25, 1
      %p111 = por %p109, %p110
      %p113 = scmp.ne.s32.totalorder %s98, %s112
      %p114 = scmp.eq.s32.totalorder %s25, 0
      %p115 = por %p113, %p114
      %s117 = sadd.s32 %s116, 1
      %p120 = scmp.eq.s32.totalorder %s19, 1
      %p121 = scmp.ne.s32.totalorder %s116, %s118
      %p122 = scmp.eq.s32.totalorder %s19, 0
      %p123 = por %p121, %p122
      %p124 = scmp.ne.s32.totalorder %s116, %s118
      %p125 = scmp.eq.s32.totalorder %s24, 1
      %p126 = por %p124, %p125
      %p127 = scmp.ne.s32.totalorder %s118, %s119
      %p128 = scmp.eq.s32.totalorder %s24, 0
      %p129 = por %p127, %p128
      %p130 = scmp.ne.s32.totalorder %s118, %s119
      %p131 = scmp.eq.s32.totalorder %s25, 1
      %p132 = por %p130, %p131
      %p134 = scmp.ne.s32.totalorder %s119, %s133
      %p135 = scmp.eq.s32.totalorder %s25, 0
      %p136 = por %p134, %p135
      %s138 = sadd.s32 %s137, 1
      %p141 = scmp.eq.s32.totalorder %s19, 1
      %p142 = scmp.ne.s32.totalorder %s137, %s139
      %p143 = scmp.eq.s32.totalorder %s19, 0
      %p144 = por %p142, %p143
      %p145 = scmp.ne.s32.totalorder %s137, %s139
      %p146 = scmp.eq.s32.totalorder %s24, 1
      %p147 = por %p145, %p146
      %p148 = scmp.ne.s32.totalorder %s139, %s140
      %p149 = scmp.eq.s32.totalorder %s24, 0
      %p150 = por %p148, %p149
      %p151 = scmp.ne.s32.totalorder %s139, %s140
      %p152 = scmp.eq.s32.totalorder %s25, 1
      %p153 = por %p151, %p152
      %p155 = scmp.ne.s32.totalorder %s140, %s154
      %p156 = scmp.eq.s32.totalorder %s25, 0
      %p157 = por %p155, %p156
      %s158 = ssub.s32 %s19, %s26
      %p159 = scmp.eq.s32.totalorder %s158, 0
      %s161 = sadd.s32 %s160, 1
      %s162 = scalar_select %p159, %s160, %s161
      %p165 = pneg %p159
      %p166 = scmp.eq.s32.totalorder %s19, 1
      %p167 = por %p165, %p166
      %p168 = scmp.ne.s32.totalorder %s160, %s163
      %p169 = scmp.eq.s32.totalorder %s19, 0
      %p170 = por %p168, %p169
      %p171 = scmp.ne.s32.totalorder %s160, %s163
      %p172 = scmp.eq.s32.totalorder %s24, 1
      %p173 = por %p171, %p172
      %p174 = scmp.ne.s32.totalorder %s163, %s164
      %p175 = scmp.eq.s32.totalorder %s24, 0
      %p176 = por %p174, %p175
      %p177 = scmp.ne.s32.totalorder %s163, %s164
      %p178 = scmp.eq.s32.totalorder %s25, 1
      %p179 = por %p177, %p178
      %p181 = scmp.ne.s32.totalorder %s164, %s180
      %p182 = scmp.eq.s32.totalorder %s25, 0
      %p183 = por %p181, %p182
      %p184 = scmp.le.s32.totalorder 1, %s19
      %p185 = scmp.lt.s32.totalorder %s19, 3
      %p186 = pnand %p184, %p185
      %p187 = pneg %p186
      // Predicated region
      $region9: #{tpu_custom_call.1} parent=5 // pred_check
        _
      $region10: #{tpu_custom_call.1} parent=5 // pred_check_branch
        %189 = sbr.rel (%p186) target = $region12
      $region11: #{tpu_custom_call.1} parent=5 // pred_region
        %s190 = ssub.s32 %s19, 1
        // Predicated region
        $region13: #{tpu_custom_call.1} parent=11 // pred_check
          %p191 = pneg %p66
        $region14: #{tpu_custom_call.1} parent=11 // pred_check_branch
          %193 = sbr.rel (%p191) target = $region16
        $region15: #{tpu_custom_call.1} parent=11 // pred_region
          _
        $region16: #{tpu_custom_call.1} parent=11 // pred_fallthru
          _
        // Predicated region
        $region17: #{tpu_custom_call.1} parent=11 // pred_check
          %p194 = pneg %p87
        $region18: #{tpu_custom_call.1} parent=11 // pred_check_branch
          %196 = sbr.rel (%p194) target = $region20
        $region19: #{tpu_custom_call.1} parent=11 // pred_region
          _
        $region20: #{tpu_custom_call.1} parent=11 // pred_fallthru
          _
        // Predicated region
        $region21: #{tpu_custom_call.1} parent=11 // pred_check
          %p197 = pneg %p108
        $region22: #{tpu_custom_call.1} parent=11 // pred_check_branch
          %199 = sbr.rel (%p197) target = $region24
        $region23: #{tpu_custom_call.1} parent=11 // pred_region
          %s201 = ssub.s32 1024, 1024
          %202 = vsyncadd [#allocation6], %s201
          %s203 = sshll.u32 [#allocation5], 4
          %s204 = int_to_ptr.vmem [resolvable:$true] %s203
          %209 = dma.hbm_to_vmem [thread:$0]  %s3, 1024, %s204, [#allocation6], 128, 128, 8
        $region24: #{tpu_custom_call.1} parent=11 // pred_fallthru
          _
        // Predicated region
        $region25: #{tpu_custom_call.1} parent=11 // pred_check
          %p210 = pneg %p129
        $region26: #{tpu_custom_call.1} parent=11 // pred_check_branch
          %212 = sbr.rel (%p210) target = $region28
        $region27: #{tpu_custom_call.1} parent=11 // pred_region
          %s214 = ssub.s32 512, 512
          %215 = vsyncadd [#allocation6], %s214
          %s216 = sshll.u32 [#allocation7], 4
          %s217 = int_to_ptr.vmem [resolvable:$true] %s216
          %222 = dma.hbm_to_vmem [thread:$0]  %s4, 512, %s217, [#allocation6], 64, 64, 4
        $region28: #{tpu_custom_call.1} parent=11 // pred_fallthru
          _
        // Predicated region
        $region29: #{tpu_custom_call.1} parent=11 // pred_check
          %p223 = pneg %p150
        $region30: #{tpu_custom_call.1} parent=11 // pred_check_branch
          %225 = sbr.rel (%p223) target = $region32
        $region31: #{tpu_custom_call.1} parent=11 // pred_region
          _
        $region32: #{tpu_custom_call.1} parent=11 // pred_fallthru
          _
      $region12: #{tpu_custom_call.1} parent=5 // pred_fallthru
        _
      %p226 = scmp.lt.s32.totalorder %s19, 2
      // Predicated region
      $region33: #{tpu_custom_call.1} parent=5 // pred_check
        %p227 = pneg %p226
      $region34: #{tpu_custom_call.1} parent=5 // pred_check_branch
        %229 = sbr.rel (%p227) target = $region36
      $region35: #{tpu_custom_call.1} parent=5 // pred_region
        // Predicated region
        $region37: #{tpu_custom_call.1} parent=35 // pred_check
          %p230 = pneg %p39
        $region38: #{tpu_custom_call.1} parent=35 // pred_check_branch
          %232 = sbr.rel (%p230) target = $region40
        $region39: #{tpu_custom_call.1} parent=35 // pred_region
          %s233 = sand.u32 %s29, 1
          %s234 = scalar_lea.sflag [#allocation3], %s233
          %s235 = sand.u32 %s29, 1
          %s236 = smul.addr %s235, 8
          %s237 = scalar_lea.vmem [#allocation2], %s236
          %s239 = ssub.s32 128, 128
          %240 = vsyncadd %s234, %s239
          %s241 = smul.addr %s19, 128
          %s242 = scalar_lea.hbm %s0, %s241
          %s244 = sshll.u32 %s237, 4
          %s245 = int_to_ptr.vmem [resolvable:$true] %s244
          %247 = dma.hbm_to_vmem [thread:$0]  %s242, 128, %s245, %s234
        $region40: #{tpu_custom_call.1} parent=35 // pred_fallthru
          _
      $region36: #{tpu_custom_call.1} parent=5 // pred_fallthru
        _
      %p248 = scmp.le.s32.totalorder 1, %s19
      %p249 = scmp.lt.s32.totalorder %s19, 3
      %p250 = pnand %p248, %p249
      %p251 = pneg %p250
      // Predicated region
      $region41: #{tpu_custom_call.1} parent=5 // pred_check
        _
      $region42: #{tpu_custom_call.1} parent=5 // pred_check_branch
        %253 = sbr.rel (%p250) target = $region44
      $region43: #{tpu_custom_call.1} parent=5 // pred_region
        %s254 = ssub.s32 %s19, 1
        %s255 = sand.u32 %s32, 1
        %s256 = scalar_lea.sflag [#allocation3], %s255
        %s257 = sand.u32 %s32, 1
        %s258 = smul.addr %s257, 8
        %s259 = scalar_lea.vmem [#allocation2], %s258
        // Predicated region
        $region45: #{tpu_custom_call.1} parent=43 // pred_check
          %p260 = pneg %p45
        $region46: #{tpu_custom_call.1} parent=43 // pred_check_branch
          %262 = sbr.rel (%p260) target = $region48
        $region47: #{tpu_custom_call.1} parent=43 // pred_region
          %263 = dma.done %s256, 128
        $region48: #{tpu_custom_call.1} parent=43 // pred_fallthru
          _
        // Predicated region
        $region49: #{tpu_custom_call.1} parent=43 // pred_check
          %p264 = pneg %p108
        $region50: #{tpu_custom_call.1} parent=43 // pred_check_branch
          %266 = sbr.rel (%p264) target = $region52
        $region51: #{tpu_custom_call.1} parent=43 // pred_region
          %267 = dma.done [#allocation6], 1024
        $region52: #{tpu_custom_call.1} parent=43 // pred_fallthru
          _
        // Predicated region
        $region53: #{tpu_custom_call.1} parent=43 // pred_check
          %p268 = pneg %p129
        $region54: #{tpu_custom_call.1} parent=43 // pred_check_branch
          %270 = sbr.rel (%p268) target = $region56
        $region55: #{tpu_custom_call.1} parent=43 // pred_region
          %271 = dma.done [#allocation6], 512
        $region56: #{tpu_custom_call.1} parent=43 // pred_fallthru
          _
        %s272 = sand.u32 %s32, 1
        %s273 = scalar_lea.sflag [#allocation3], %s272
        %s274 = sand.u32 %s32, 1
        %s275 = smul.addr %s274, 8
        %s276 = scalar_lea.vmem [#allocation2], %s275
        %p277 = pneg %p45
        %p278 = pneg %p42
        %p279 = pneg %p66
        %p280 = pneg %p63
        %p281 = pneg %p87
        %p282 = pneg %p84
        %p283 = pneg %p108
        %p284 = pneg %p105
        %p285 = pneg %p129
        %p286 = pneg %p126
        %p287 = pneg %p150
        %p288 = pneg %p147
        %p289 = pneg %p176
        %p290 = pneg %p173
        %s291 = sand.u32 %s163, 1
        %s292 = scalar_lea.sflag [#allocation4], %s291
        %s293 = sand.u32 %s163, 1
        %s294 = smul.addr %s293, 8
        %s295 = scalar_lea.vmem [#allocation8], %s294
        %v297 = vld [vmem:[%s259] sm:$0xff]
        %vm298 = vcmask 523264
        %v299 = vsel %vm298, %v297, 0.0
        %300 = vadd.xlane.f32.xlu0 %v299
        %v301 = vpop.xlane.xlu0 %300
        %v302 = vrcp.pop 64.0
        %v303 = vmul.f32 %v301, %v302
        %v304 = vsub.f32 %v297, %v303
        %v305 = vmul.f32 %v304, %v304
        %v306 = vsel %vm298, %v305, 0.0
        %307 = vadd.xlane.f32.xlu0 %v306
        %v308 = vpop.xlane.xlu0 %307
        %v309 = vmul.f32 %v308, %v302
        %v310 = vld [vmem:[%s1] sm:$0x1]
        %v311 = vadd.f32 %v309, 1e-05
        %v312 = vrsqrt.pop %v311
        %v313 = vmul.f32 %v304, %v312
        %v315 = vlaneseq
        %v316 = vshrl.u32 %v315, 7
        %v317 = vsub.s32 0, %v316
        %v318 = vrot.slane %v310, %v317
        %v320 = vmul.f32 %v318, %v313
        %v321 = vld [vmem:[%s2] sm:$0x1]
        %v323 = vlaneseq
        %v324 = vshrl.u32 %v323, 7
        %v325 = vsub.s32 0, %v324
        %v326 = vrot.slane %v321, %v325
        %v328 = vadd.f32 %v320, %v326
        %v329 = vpack.c.bf16 %v328, %v328
        %v330 = vld [vmem:[#allocation5] sm:$0xff]
        %v331 = vld [vmem:[#allocation5 + $0x8] sm:$0xff]
        %v332 = vld [vmem:[#allocation5 + $0x10] sm:$0xff]
        %v333 = vld [vmem:[#allocation5 + $0x18] sm:$0xff]
        %v334 = vld [vmem:[#allocation5 + $0x20] sm:$0xff]
        %v335 = vld [vmem:[#allocation5 + $0x28] sm:$0xff]
        %v336 = vld [vmem:[#allocation5 + $0x30] sm:$0xff]
        %v337 = vld [vmem:[#allocation5 + $0x38] sm:$0xff]
        %v346 = vunpack.c.l.b16 %v330
        %v347 = vunpack.c.h.b16 %v330
        %v348 = vunpack.c.l.b16 %v331
        %v349 = vunpack.c.h.b16 %v331
        %v350 = vunpack.c.l.b16 %v332
        %v351 = vunpack.c.h.b16 %v332
        %v352 = vunpack.c.l.b16 %v333
        %v353 = vunpack.c.h.b16 %v333
        %v354 = vunpack.c.l.b16 %v334
        %v355 = vunpack.c.h.b16 %v334
        %v356 = vunpack.c.l.b16 %v335
        %v357 = vunpack.c.h.b16 %v335
        %v358 = vunpack.c.l.b16 %v336
        %v359 = vunpack.c.h.b16 %v336
        %v360 = vunpack.c.l.b16 %v337
        %v361 = vunpack.c.h.b16 %v337
        %v362 = vpack.c.b16 %v348, %v346
        %v363 = vpack.c.b16 %v349, %v347
        %v364 = vpack.c.b16 %v352, %v350
        %v365 = vpack.c.b16 %v353, %v351
        %v366 = vpack.c.b16 %v356, %v354
        %v367 = vpack.c.b16 %v357, %v355
        %v368 = vpack.c.b16 %v360, %v358
        %v369 = vpack.c.b16 %v361, %v359
        %v379 = vsel %vm298, %v329, 0
        %381 = vmatprep.subr.bf16.mxu0 %v363
        %382 = vmatpush1.bf16.msra.mxu0 %v362
        %383 = vmatprep.subr.bf16.mxu0 %v365
        %384 = vmatpush1.bf16.msra.mxu0 %v364
        %385 = vmatprep.subr.bf16.mxu0 %v367
        %386 = vmatpush1.bf16.msra.mxu0 %v366
        %387 = vmatprep.subr.bf16.mxu0 %v369
        %388 = vmatpush1.bf16.msra.mxu0 %v368
        %389 = vmatprep.subr.bf16.mxu0 0
        %390 = vmatpush1.bf16.msra.mxu0 0
        %391 = vmatprep.subr.bf16.mxu0 0
        %392 = vmatpush1.bf16.msra.mxu0 0
        %393 = vmatprep.subr.bf16.mxu0 0
        %394 = vmatpush1.bf16.msra.mxu0 0
        %395 = vmatprep.subr.bf16.mxu0 0
        %396 = vmatpush1.bf16.msra.mxu0 0
        %397 = vmatprep.subr.bf16.mxu0 0
        %398 = vmatpush1.bf16.msra.mxu0 0
        %399 = vmatprep.subr.bf16.mxu0 0
        %400 = vmatpush1.bf16.msra.mxu0 0
        %401 = vmatprep.subr.bf16.mxu0 0
        %402 = vmatpush1.bf16.msra.mxu0 0
        %403 = vmatprep.subr.bf16.mxu0 0
        %404 = vmatpush1.bf16.msra.mxu0 0
        %405 = vmatprep.subr.bf16.mxu0 0
        %406 = vmatpush1.bf16.msra.mxu0 0
        %407 = vmatprep.subr.bf16.mxu0 0
        %408 = vmatpush1.bf16.msra.mxu0 0
        %409 = vmatprep.subr.bf16.mxu0 0
        %410 = vmatpush1.bf16.msra.mxu0 0
        %411 = vmatprep.subr.bf16.mxu0 0
        %412 = vmatpush1.bf16.msra.mxu0 0
        %413 = vmatprep.mubr.bf16.mxu0 0
        %414 = vmatmul.mubr.bf16.gmra.mrb[0].mxu0 %v379
        %v415 = vpop.f32.mrb[0].mxu0
        %v416 = vadd.f32 0.0, %v415
        %v417 = vpop.f32.mrb[0].mxu0
        %v418 = vadd.f32 0.0, %v417
        %v419 = vpop.f32.mrb[0].mxu0
        %v420 = vpop.f32.mrb[0].mxu0
        %421 = vdwg.mxu0
        %423 = vrot.lane.b32.xlu0 %v416, 112
        %v424 = vpop.permute.xlu0 %423
        %426 = vrot.lane.b32.xlu0 %v416, 96
        %v427 = vpop.permute.xlu0 %426
        %429 = vrot.lane.b32.xlu0 %v416, 80
        %v430 = vpop.permute.xlu0 %429
        %v432 = vcombine.low %v416, %v427
        %v433 = vcombine.high %v416, %v427
        %v435 = vunpack.c.l.s4 1983009808
        %v436 = vunpack.c.0.s8 %v435
        %v437 = vlaneseq
        %v438 = vshrl.u32 %v437, 7
        %v439 = vsub.s32 %v436, %v438
        %v440 = vrot.slane %v432, %v439
        %v442 = vunpack.c.l.s4 1983009808
        %v443 = vunpack.c.0.s8 %v442
        %v444 = vlaneseq
        %v445 = vshrl.u32 %v444, 7
        %v446 = vsub.s32 %v443, %v445
        %v447 = vrot.slane %v433, %v446
        %v448 = vcombine.low %v424, %v430
        %v449 = vcombine.high %v424, %v430
        %v451 = vunpack.c.l.s4 1983009808
        %v452 = vunpack.c.0.s8 %v451
        %v453 = vlaneseq
        %v454 = vshrl.u32 %v453, 7
        %v455 = vsub.s32 %v452, %v454
        %v456 = vrot.slane %v448, %v455
        %v458 = vunpack.c.l.s4 1983009808
        %v459 = vunpack.c.0.s8 %v458
        %v460 = vlaneseq
        %v461 = vshrl.u32 %v460, 7
        %v462 = vsub.s32 %v459, %v461
        %v463 = vrot.slane %v449, %v462
        %v464 = vcombine.low %v440, %v456
        %v465 = vcombine.high %v440, %v456
        %v467 = vunpack.c.l.s4 1934713408
        %v468 = vunpack.c.0.s8 %v467
        %v469 = vlaneseq
        %v470 = vshrl.u32 %v469, 7
        %v471 = vsub.s32 %v468, %v470
        %v472 = vrot.slane %v464, %v471
        %v474 = vunpack.c.l.s4 1934713408
        %v475 = vunpack.c.0.s8 %v474
        %v476 = vlaneseq
        %v477 = vshrl.u32 %v476, 7
        %v478 = vsub.s32 %v475, %v477
        %v479 = vrot.slane %v465, %v478
        %v480 = vcombine.low %v447, %v463
        %v481 = vcombine.high %v447, %v463
        %v483 = vunpack.c.l.s4 1934713408
        %v484 = vunpack.c.0.s8 %v483
        %v485 = vlaneseq
        %v486 = vshrl.u32 %v485, 7
        %v487 = vsub.s32 %v484, %v486
        %v488 = vrot.slane %v480, %v487
        %v490 = vunpack.c.l.s4 1934713408
        %v491 = vunpack.c.0.s8 %v490
        %v492 = vlaneseq
        %v493 = vshrl.u32 %v492, 7
        %v494 = vsub.s32 %v491, %v493
        %v495 = vrot.slane %v481, %v494
        %v496 = vcombine.high %v472, 0.0
        %v497 = vcombine.high %v479, 0.0
        %v498 = vcombine.high %v488, 0.0
        %v499 = vcombine.high %v495, 0.0
        %v500 = vcombine.low %v472, %v479
        %v502 = vunpack.c.l.s4 1983009808
        %v503 = vunpack.c.0.s8 %v502
        %v504 = vlaneseq
        %v505 = vshrl.u32 %v504, 7
        %v506 = vsub.s32 %v503, %v505
        %v507 = vrot.slane %v500, %v506
        %v508 = vcombine.low %v496, %v497
        %v510 = vunpack.c.l.s4 1983009808
        %v511 = vunpack.c.0.s8 %v510
        %v512 = vlaneseq
        %v513 = vshrl.u32 %v512, 7
        %v514 = vsub.s32 %v511, %v513
        %v515 = vrot.slane %v508, %v514
        %v516 = vcombine.low %v488, %v495
        %v518 = vunpack.c.l.s4 1983009808
        %v519 = vunpack.c.0.s8 %v518
        %v520 = vlaneseq
        %v521 = vshrl.u32 %v520, 7
        %v522 = vsub.s32 %v519, %v521
        %v523 = vrot.slane %v516, %v522
        %v524 = vcombine.low %v498, %v499
        %v526 = vunpack.c.l.s4 1983009808
        %v527 = vunpack.c.0.s8 %v526
        %v528 = vlaneseq
        %v529 = vshrl.u32 %v528, 7
        %v530 = vsub.s32 %v527, %v529
        %v531 = vrot.slane %v524, %v530
        %v532 = vcombine.low %v507, %v515
        %v533 = vcombine.high %v507, %v515
        %v535 = vunpack.c.l.s4 1934713408
        %v536 = vunpack.c.0.s8 %v535
        %v537 = vlaneseq
        %v538 = vshrl.u32 %v537, 7
        %v539 = vsub.s32 %v536, %v538
        %v540 = vrot.slane %v532, %v539
        %v542 = vunpack.c.l.s4 1934713408
        %v543 = vunpack.c.0.s8 %v542
        %v544 = vlaneseq
        %v545 = vshrl.u32 %v544, 7
        %v546 = vsub.s32 %v543, %v545
        %v547 = vrot.slane %v533, %v546
        %v548 = vcombine.low %v523, %v531
        %v549 = vcombine.high %v523, %v531
        %v551 = vunpack.c.l.s4 1934713408
        %v552 = vunpack.c.0.s8 %v551
        %v553 = vlaneseq
        %v554 = vshrl.u32 %v553, 7
        %v555 = vsub.s32 %v552, %v554
        %v556 = vrot.slane %v548, %v555
        %v558 = vunpack.c.l.s4 1934713408
        %v559 = vunpack.c.0.s8 %v558
        %v560 = vlaneseq
        %v561 = vshrl.u32 %v560, 7
        %v562 = vsub.s32 %v559, %v561
        %v563 = vrot.slane %v549, %v562
        %v564 = vcombine.low %v540, %v556
        %v565 = vcombine.high %v540, %v556
        %v566 = vcombine.low %v547, %v563
        %v567 = vcombine.high %v547, %v563
        %v568 = vpack.c.bf16 %v564, %v564
        %v569 = vpack.c.bf16 %v565, %v565
        %v570 = vpack.c.bf16 %v566, %v566
        %v571 = vpack.c.bf16 %v567, %v567
        %572 = vrot.lane.b32.xlu0 %v416, 64
        %v573 = vpop.permute.xlu0 %572
        %574 = vrot.lane.b32.xlu0 %v424, 64
        %v575 = vpop.permute.xlu0 %574
        %576 = vrot.lane.b32.xlu0 %v427, 64
        %v577 = vpop.permute.xlu0 %576
        %578 = vrot.lane.b32.xlu0 %v430, 64
        %v579 = vpop.permute.xlu0 %578
        %v584 = vcombine.low %v573, %v577
        %v585 = vcombine.high %v573, %v577
        %v587 = vunpack.c.l.s4 1983009808
        %v588 = vunpack.c.0.s8 %v587
        %v589 = vlaneseq
        %v590 = vshrl.u32 %v589, 7
        %v591 = vsub.s32 %v588, %v590
        %v592 = vrot.slane %v584, %v591
        %v594 = vunpack.c.l.s4 1983009808
        %v595 = vunpack.c.0.s8 %v594
        %v596 = vlaneseq
        %v597 = vshrl.u32 %v596, 7
        %v598 = vsub.s32 %v595, %v597
        %v599 = vrot.slane %v585, %v598
        %v600 = vcombine.low %v575, %v579
        %v601 = vcombine.high %v575, %v579
        %v603 = vunpack.c.l.s4 1983009808
        %v604 = vunpack.c.0.s8 %v603
        %v605 = vlaneseq
        %v606 = vshrl.u32 %v605, 7
        %v607 = vsub.s32 %v604, %v606
        %v608 = vrot.slane %v600, %v607
        %v610 = vunpack.c.l.s4 1983009808
        %v611 = vunpack.c.0.s8 %v610
        %v612 = vlaneseq
        %v613 = vshrl.u32 %v612, 7
        %v614 = vsub.s32 %v611, %v613
        %v615 = vrot.slane %v601, %v614
        %v616 = vcombine.low %v592, %v608
        %v617 = vcombine.high %v592, %v608
        %v619 = vunpack.c.l.s4 1934713408
        %v620 = vunpack.c.0.s8 %v619
        %v621 = vlaneseq
        %v622 = vshrl.u32 %v621, 7
        %v623 = vsub.s32 %v620, %v622
        %v624 = vrot.slane %v616, %v623
        %v626 = vunpack.c.l.s4 1934713408
        %v627 = vunpack.c.0.s8 %v626
        %v628 = vlaneseq
        %v629 = vshrl.u32 %v628, 7
        %v630 = vsub.s32 %v627, %v629
        %v631 = vrot.slane %v617, %v630
        %v632 = vcombine.low %v599, %v615
        %v633 = vcombine.high %v599, %v615
        %v635 = vunpack.c.l.s4 1934713408
        %v636 = vunpack.c.0.s8 %v635
        %v637 = vlaneseq
        %v638 = vshrl.u32 %v637, 7
        %v639 = vsub.s32 %v636, %v638
        %v640 = vrot.slane %v632, %v639
        %v642 = vunpack.c.l.s4 1934713408
        %v643 = vunpack.c.0.s8 %v642
        %v644 = vlaneseq
        %v645 = vshrl.u32 %v644, 7
        %v646 = vsub.s32 %v643, %v645
        %v647 = vrot.slane %v633, %v646
        %v648 = vcombine.high %v624, 0.0
        %v649 = vcombine.high %v631, 0.0
        %v650 = vcombine.high %v640, 0.0
        %v651 = vcombine.high %v647, 0.0
        %v652 = vcombine.low %v624, %v631
        %v654 = vunpack.c.l.s4 1983009808
        %v655 = vunpack.c.0.s8 %v654
        %v656 = vlaneseq
        %v657 = vshrl.u32 %v656, 7
        %v658 = vsub.s32 %v655, %v657
        %v659 = vrot.slane %v652, %v658
        %v660 = vcombine.low %v648, %v649
        %v662 = vunpack.c.l.s4 1983009808
        %v663 = vunpack.c.0.s8 %v662
        %v664 = vlaneseq
        %v665 = vshrl.u32 %v664, 7
        %v666 = vsub.s32 %v663, %v665
        %v667 = vrot.slane %v660, %v666
        %v668 = vcombine.low %v640, %v647
        %v670 = vunpack.c.l.s4 1983009808
        %v671 = vunpack.c.0.s8 %v670
        %v672 = vlaneseq
        %v673 = vshrl.u32 %v672, 7
        %v674 = vsub.s32 %v671, %v673
        %v675 = vrot.slane %v668, %v674
        %v676 = vcombine.low %v650, %v651
        %v678 = vunpack.c.l.s4 1983009808
        %v679 = vunpack.c.0.s8 %v678
        %v680 = vlaneseq
        %v681 = vshrl.u32 %v680, 7
        %v682 = vsub.s32 %v679, %v681
        %v683 = vrot.slane %v676, %v682
        %v684 = vcombine.low %v659, %v667
        %v685 = vcombine.high %v659, %v667
        %v687 = vunpack.c.l.s4 1934713408
        %v688 = vunpack.c.0.s8 %v687
        %v689 = vlaneseq
        %v690 = vshrl.u32 %v689, 7
        %v691 = vsub.s32 %v688, %v690
        %v692 = vrot.slane %v684, %v691
        %v694 = vunpack.c.l.s4 1934713408
        %v695 = vunpack.c.0.s8 %v694
        %v696 = vlaneseq
        %v697 = vshrl.u32 %v696, 7
        %v698 = vsub.s32 %v695, %v697
        %v699 = vrot.slane %v685, %v698
        %v700 = vcombine.low %v675, %v683
        %v701 = vcombine.high %v675, %v683
        %v703 = vunpack.c.l.s4 1934713408
        %v704 = vunpack.c.0.s8 %v703
        %v705 = vlaneseq
        %v706 = vshrl.u32 %v705, 7
        %v707 = vsub.s32 %v704, %v706
        %v708 = vrot.slane %v700, %v707
        %v710 = vunpack.c.l.s4 1934713408
        %v711 = vunpack.c.0.s8 %v710
        %v712 = vlaneseq
        %v713 = vshrl.u32 %v712, 7
        %v714 = vsub.s32 %v711, %v713
        %v715 = vrot.slane %v701, %v714
        %v716 = vcombine.low %v692, %v708
        %v717 = vcombine.high %v692, %v708
        %v718 = vcombine.low %v699, %v715
        %v719 = vcombine.high %v699, %v715
        %v720 = vpack.c.bf16 %v716, %v716
        %v721 = vpack.c.bf16 %v717, %v717
        %v722 = vpack.c.bf16 %v718, %v718
        %v723 = vpack.c.bf16 %v719, %v719
        %725 = vrot.lane.b32.xlu0 %v418, 112
        %v726 = vpop.permute.xlu0 %725
        %728 = vrot.lane.b32.xlu0 %v418, 96
        %v729 = vpop.permute.xlu0 %728
        %731 = vrot.lane.b32.xlu0 %v418, 80
        %v732 = vpop.permute.xlu0 %731
        %v734 = vcombine.low %v418, %v729
        %v735 = vcombine.high %v418, %v729
        %v737 = vunpack.c.l.s4 1983009808
        %v738 = vunpack.c.0.s8 %v737
        %v739 = vlaneseq
        %v740 = vshrl.u32 %v739, 7
        %v741 = vsub.s32 %v738, %v740
        %v742 = vrot.slane %v734, %v741
        %v744 = vunpack.c.l.s4 1983009808
        %v745 = vunpack.c.0.s8 %v744
        %v746 = vlaneseq
        %v747 = vshrl.u32 %v746, 7
        %v748 = vsub.s32 %v745, %v747
        %v749 = vrot.slane %v735, %v748
        %v750 = vcombine.low %v726, %v732
        %v751 = vcombine.high %v726, %v732
        %v753 = vunpack.c.l.s4 1983009808
        %v754 = vunpack.c.0.s8 %v753
        %v755 = vlaneseq
        %v756 = vshrl.u32 %v755, 7
        %v757 = vsub.s32 %v754, %v756
        %v758 = vrot.slane %v750, %v757
        %v760 = vunpack.c.l.s4 1983009808
        %v761 = vunpack.c.0.s8 %v760
        %v762 = vlaneseq
        %v763 = vshrl.u32 %v762, 7
        %v764 = vsub.s32 %v761, %v763
        %v765 = vrot.slane %v751, %v764
        %v766 = vcombine.low %v742, %v758
        %v767 = vcombine.high %v742, %v758
        %v769 = vunpack.c.l.s4 1934713408
        %v770 = vunpack.c.0.s8 %v769
        %v771 = vlaneseq
        %v772 = vshrl.u32 %v771, 7
        %v773 = vsub.s32 %v770, %v772
        %v774 = vrot.slane %v766, %v773
        %v776 = vunpack.c.l.s4 1934713408
        %v777 = vunpack.c.0.s8 %v776
        %v778 = vlaneseq
        %v779 = vshrl.u32 %v778, 7
        %v780 = vsub.s32 %v777, %v779
        %v781 = vrot.slane %v767, %v780
        %v782 = vcombine.low %v749, %v765
        %v783 = vcombine.high %v749, %v765
        %v785 = vunpack.c.l.s4 1934713408
        %v786 = vunpack.c.0.s8 %v785
        %v787 = vlaneseq
        %v788 = vshrl.u32 %v787, 7
        %v789 = vsub.s32 %v786, %v788
        %v790 = vrot.slane %v782, %v789
        %v792 = vunpack.c.l.s4 1934713408
        %v793 = vunpack.c.0.s8 %v792
        %v794 = vlaneseq
        %v795 = vshrl.u32 %v794, 7
        %v796 = vsub.s32 %v793, %v795
        %v797 = vrot.slane %v783, %v796
        %v798 = vcombine.high %v774, 0.0
        %v799 = vcombine.high %v781, 0.0
        %v800 = vcombine.high %v790, 0.0
        %v801 = vcombine.high %v797, 0.0
        %v802 = vcombine.low %v774, %v781
        %v804 = vunpack.c.l.s4 1983009808
        %v805 = vunpack.c.0.s8 %v804
        %v806 = vlaneseq
        %v807 = vshrl.u32 %v806, 7
        %v808 = vsub.s32 %v805, %v807
        %v809 = vrot.slane %v802, %v808
        %v810 = vcombine.low %v798, %v799
        %v812 = vunpack.c.l.s4 1983009808
        %v813 = vunpack.c.0.s8 %v812
        %v814 = vlaneseq
        %v815 = vshrl.u32 %v814, 7
        %v816 = vsub.s32 %v813, %v815
        %v817 = vrot.slane %v810, %v816
        %v818 = vcombine.low %v790, %v797
        %v820 = vunpack.c.l.s4 1983009808
        %v821 = vunpack.c.0.s8 %v820
        %v822 = vlaneseq
        %v823 = vshrl.u32 %v822, 7
        %v824 = vsub.s32 %v821, %v823
        %v825 = vrot.slane %v818, %v824
        %v826 = vcombine.low %v800, %v801
        %v828 = vunpack.c.l.s4 1983009808
        %v829 = vunpack.c.0.s8 %v828
        %v830 = vlaneseq
        %v831 = vshrl.u32 %v830, 7
        %v832 = vsub.s32 %v829, %v831
        %v833 = vrot.slane %v826, %v832
        %v834 = vcombine.low %v809, %v817
        %v835 = vcombine.high %v809, %v817
        %v837 = vunpack.c.l.s4 1934713408
        %v838 = vunpack.c.0.s8 %v837
        %v839 = vlaneseq
        %v840 = vshrl.u32 %v839, 7
        %v841 = vsub.s32 %v838, %v840
        %v842 = vrot.slane %v834, %v841
        %v844 = vunpack.c.l.s4 1934713408
        %v845 = vunpack.c.0.s8 %v844
        %v846 = vlaneseq
        %v847 = vshrl.u32 %v846, 7
        %v848 = vsub.s32 %v845, %v847
        %v849 = vrot.slane %v835, %v848
        %v850 = vcombine.low %v825, %v833
        %v851 = vcombine.high %v825, %v833
        %v853 = vunpack.c.l.s4 1934713408
        %v854 = vunpack.c.0.s8 %v853
        %v855 = vlaneseq
        %v856 = vshrl.u32 %v855, 7
        %v857 = vsub.s32 %v854, %v856
        %v858 = vrot.slane %v850, %v857
        %v860 = vunpack.c.l.s4 1934713408
        %v861 = vunpack.c.0.s8 %v860
        %v862 = vlaneseq
        %v863 = vshrl.u32 %v862, 7
        %v864 = vsub.s32 %v861, %v863
        %v865 = vrot.slane %v851, %v864
        %v866 = vcombine.low %v842, %v858
        %v867 = vcombine.high %v842, %v858
        %v868 = vcombine.low %v849, %v865
        %v869 = vcombine.high %v849, %v865
        %v870 = vpack.c.bf16 %v866, %v866
        %v871 = vpack.c.bf16 %v867, %v867
        %v872 = vpack.c.bf16 %v868, %v868
        %v873 = vpack.c.bf16 %v869, %v869
        %vm874 = vcmask 130048
        %v876 = vsel %vm874, %v568, 0
        %v879 = vsel %vm874, %v720, 0
        %881 = vmatprep.subr.bf16.mxu0 0
        %882 = vmatpush1.bf16.xpose.msra.mxu0 %v879
        %883 = vmatprep.subr.bf16.mxu0 0
        %884 = vmatpush1.bf16.xpose.msra.mxu0 0
        %885 = vmatprep.subr.bf16.mxu0 0
        %886 = vmatpush1.bf16.xpose.msra.mxu0 0
        %887 = vmatprep.subr.bf16.mxu0 0
        %888 = vmatpush1.bf16.xpose.msra.mxu0 0
        %889 = vmatprep.subr.bf16.mxu0 0
        %890 = vmatpush1.bf16.xpose.msra.mxu0 0
        %891 = vmatprep.subr.bf16.mxu0 0
        %892 = vmatpush1.bf16.xpose.msra.mxu0 0
        %893 = vmatprep.subr.bf16.mxu0 0
        %894 = vmatpush1.bf16.xpose.msra.mxu0 0
        %895 = vmatprep.subr.bf16.mxu0 0
        %896 = vmatpush1.bf16.xpose.msra.mxu0 0
        %897 = vmatprep.subr.bf16.mxu0 0
        %898 = vmatpush1.bf16.xpose.msra.mxu0 0
        %899 = vmatprep.subr.bf16.mxu0 0
        %900 = vmatpush1.bf16.xpose.msra.mxu0 0
        %901 = vmatprep.subr.bf16.mxu0 0
        %902 = vmatpush1.bf16.xpose.msra.mxu0 0
        %903 = vmatprep.subr.bf16.mxu0 0
        %904 = vmatpush1.bf16.xpose.msra.mxu0 0
        %905 = vmatprep.subr.bf16.mxu0 0
        %906 = vmatpush1.bf16.xpose.msra.mxu0 0
        %907 = vmatprep.subr.bf16.mxu0 0
        %908 = vmatpush1.bf16.xpose.msra.mxu0 0
        %909 = vmatprep.subr.bf16.mxu0 0
        %910 = vmatpush1.bf16.xpose.msra.mxu0 0
        %911 = vmatprep.subr.bf16.mxu0 0
        %912 = vmatpush1.bf16.xpose.msra.mxu0 0
        %913 = vmatprep.mubr.bf16.mxu0 0
        %914 = vmatmul.mubr.bf16.gmra.mrb[0].mxu0 %v876
        %v915 = vpop.f32.mrb[0].mxu0
        %v916 = vadd.f32 0.0, %v915
        %v917 = vpop.f32.mrb[0].mxu0
        %v918 = vpop.f32.mrb[0].mxu0
        %v919 = vpop.f32.mrb[0].mxu0
        %920 = vdwg.mxu0
        %v922 = vsel %vm874, %v569, 0
        %v925 = vsel %vm874, %v721, 0
        %927 = vmatprep.subr.bf16.mxu0 0
        %928 = vmatpush1.bf16.xpose.msra.mxu0 %v925
        %929 = vmatprep.subr.bf16.mxu0 0
        %930 = vmatpush1.bf16.xpose.msra.mxu0 0
        %931 = vmatprep.subr.bf16.mxu0 0
        %932 = vmatpush1.bf16.xpose.msra.mxu0 0
        %933 = vmatprep.subr.bf16.mxu0 0
        %934 = vmatpush1.bf16.xpose.msra.mxu0 0
        %935 = vmatprep.subr.bf16.mxu0 0
        %936 = vmatpush1.bf16.xpose.msra.mxu0 0
        %937 = vmatprep.subr.bf16.mxu0 0
        %938 = vmatpush1.bf16.xpose.msra.mxu0 0
        %939 = vmatprep.subr.bf16.mxu0 0
        %940 = vmatpush1.bf16.xpose.msra.mxu0 0
        %941 = vmatprep.subr.bf16.mxu0 0
        %942 = vmatpush1.bf16.xpose.msra.mxu0 0
        %943 = vmatprep.subr.bf16.mxu0 0
        %944 = vmatpush1.bf16.xpose.msra.mxu0 0
        %945 = vmatprep.subr.bf16.mxu0 0
        %946 = vmatpush1.bf16.xpose.msra.mxu0 0
        %947 = vmatprep.subr.bf16.mxu0 0
        %948 = vmatpush1.bf16.xpose.msra.mxu0 0
        %949 = vmatprep.subr.bf16.mxu0 0
        %950 = vmatpush1.bf16.xpose.msra.mxu0 0
        %951 = vmatprep.subr.bf16.mxu0 0
        %952 = vmatpush1.bf16.xpose.msra.mxu0 0
        %953 = vmatprep.subr.bf16.mxu0 0
        %954 = vmatpush1.bf16.xpose.msra.mxu0 0
        %955 = vmatprep.subr.bf16.mxu0 0
        %956 = vmatpush1.bf16.xpose.msra.mxu0 0
        %957 = vmatprep.subr.bf16.mxu0 0
        %958 = vmatpush1.bf16.xpose.msra.mxu0 0
        %959 = vmatprep.mubr.bf16.mxu0 0
        %960 = vmatmul.mubr.bf16.gmra.mrb[0].mxu0 %v922
        %v961 = vpop.f32.mrb[0].mxu0
        %v962 = vadd.f32 0.0, %v961
        %v963 = vpop.f32.mrb[0].mxu0
        %v964 = vpop.f32.mrb[0].mxu0
        %v965 = vpop.f32.mrb[0].mxu0
        %966 = vdwg.mxu0
        %v968 = vsel %vm874, %v570, 0
        %v971 = vsel %vm874, %v722, 0
        %973 = vmatprep.subr.bf16.mxu0 0
        %974 = vmatpush1.bf16.xpose.msra.mxu0 %v971
        %975 = vmatprep.subr.bf16.mxu0 0
        %976 = vmatpush1.bf16.xpose.msra.mxu0 0
        %977 = vmatprep.subr.bf16.mxu0 0
        %978 = vmatpush1.bf16.xpose.msra.mxu0 0
        %979 = vmatprep.subr.bf16.mxu0 0
        %980 = vmatpush1.bf16.xpose.msra.mxu0 0
        %981 = vmatprep.subr.bf16.mxu0 0
        %982 = vmatpush1.bf16.xpose.msra.mxu0 0
        %983 = vmatprep.subr.bf16.mxu0 0
        %984 = vmatpush1.bf16.xpose.msra.mxu0 0
        %985 = vmatprep.subr.bf16.mxu0 0
        %986 = vmatpush1.bf16.xpose.msra.mxu0 0
        %987 = vmatprep.subr.bf16.mxu0 0
        %988 = vmatpush1.bf16.xpose.msra.mxu0 0
        %989 = vmatprep.subr.bf16.mxu0 0
        %990 = vmatpush1.bf16.xpose.msra.mxu0 0
        %991 = vmatprep.subr.bf16.mxu0 0
        %992 = vmatpush1.bf16.xpose.msra.mxu0 0
        %993 = vmatprep.subr.bf16.mxu0 0
        %994 = vmatpush1.bf16.xpose.msra.mxu0 0
        %995 = vmatprep.subr.bf16.mxu0 0
        %996 = vmatpush1.bf16.xpose.msra.mxu0 0
        %997 = vmatprep.subr.bf16.mxu0 0
        %998 = vmatpush1.bf16.xpose.msra.mxu0 0
        %999 = vmatprep.subr.bf16.mxu0 0
        %1000 = vmatpush1.bf16.xpose.msra.mxu0 0
        %1001 = vmatprep.subr.bf16.mxu0 0
        %1002 = vmatpush1.bf16.xpose.msra.mxu0 0
        %1003 = vmatprep.subr.bf16.mxu0 0
        %1004 = vmatpush1.bf16.xpose.msra.mxu0 0
        %1005 = vmatprep.mubr.bf16.mxu0 0
        %1006 = vmatmul.mubr.bf16.gmra.mrb[0].mxu0 %v968
        %v1007 = vpop.f32.mrb[0].mxu0
        %v1008 = vadd.f32 0.0, %v1007
        %v1009 = vpop.f32.mrb[0].mxu0
        %v1010 = vpop.f32.mrb[0].mxu0
        %v1011 = vpop.f32.mrb[0].mxu0
        %1012 = vdwg.mxu0
        %v1014 = vsel %vm874, %v571, 0
        %v1017 = vsel %vm874, %v723, 0
        %1019 = vmatprep.subr.bf16.mxu0 0
        %1020 = vmatpush1.bf16.xpose.msra.mxu0 %v1017
        %1021 = vmatprep.subr.bf16.mxu0 0
        %1022 = vmatpush1.bf16.xpose.msra.mxu0 0
        %1023 = vmatprep.subr.bf16.mxu0 0
        %1024 = vmatpush1.bf16.xpose.msra.mxu0 0
        %1025 = vmatprep.subr.bf16.mxu0 0
        %1026 = vmatpush1.bf16.xpose.msra.mxu0 0
        %1027 = vmatprep.subr.bf16.mxu0 0
        %1028 = vmatpush1.bf16.xpose.msra.mxu0 0
        %1029 = vmatprep.subr.bf16.mxu0 0
        %1030 = vmatpush1.bf16.xpose.msra.mxu0 0
        %1031 = vmatprep.subr.bf16.mxu0 0
        %1032 = vmatpush1.bf16.xpose.msra.mxu0 0
        %1033 = vmatprep.subr.bf16.mxu0 0
        %1034 = vmatpush1.bf16.xpose.msra.mxu0 0
        %1035 = vmatprep.subr.bf16.mxu0 0
        %1036 = vmatpush1.bf16.xpose.msra.mxu0 0
        %1037 = vmatprep.subr.bf16.mxu0 0
        %1038 = vmatpush1.bf16.xpose.msra.mxu0 0
        %1039 = vmatprep.subr.bf16.mxu0 0
        %1040 = vmatpush1.bf16.xpose.msra.mxu0 0
        %1041 = vmatprep.subr.bf16.mxu0 0
        %1042 = vmatpush1.bf16.xpose.msra.mxu0 0
        %1043 = vmatprep.subr.bf16.mxu0 0
        %1044 = vmatpush1.bf16.xpose.msra.mxu0 0
        %1045 = vmatprep.subr.bf16.mxu0 0
        %1046 = vmatpush1.bf16.xpose.msra.mxu0 0
        %1047 = vmatprep.subr.bf16.mxu0 0
        %1048 = vmatpush1.bf16.xpose.msra.mxu0 0
        %1049 = vmatprep.subr.bf16.mxu0 0
        %1050 = vmatpush1.bf16.xpose.msra.mxu0 0
        %1051 = vmatprep.mubr.bf16.mxu0 0
        %1052 = vmatmul.mubr.bf16.gmra.mrb[0].mxu0 %v1014
        %v1053 = vpop.f32.mrb[0].mxu0
        %v1054 = vadd.f32 0.0, %v1053
        %v1055 = vpop.f32.mrb[0].mxu0
        %v1056 = vpop.f32.mrb[0].mxu0
        %v1057 = vpop.f32.mrb[0].mxu0
        %1058 = vdwg.mxu0
        %v1059 = vlaneseq
        %v1060 = vshrl.u32 %v1059, 7
        %v1061 = vlaneseq
        %v1062 = vand.u32 %v1061, 127
        %vm1063 = vcmp.gt.s32.totalorder %v1062, %v1060
        %v1064 = vsel %vm1063, 1, 0
        %vm1065 = vcmp.eq.s32.totalorder %v1064, 1
        %v1066 = vsel %vm1065, -1e+30, %v916
        %v1067 = vsel %vm1065, -1e+30, %v962
        %v1068 = vsel %vm1065, -1e+30, %v1008
        %v1069 = vsel %vm1065, -1e+30, %v1054
        %vm1070 = vcmask 64512
        %v1071 = vsel %vm1070, %v1066, -inf
        %1072 = vmax.xlane.f32.xlu0 %v1071
        %v1073 = vpop.xlane.xlu0 %1072
        %v1074 = vsel %vm1070, %v1067, -inf
        %1075 = vmax.xlane.f32.xlu0 %v1074
        %v1076 = vpop.xlane.xlu0 %1075
        %v1077 = vsel %vm1070, %v1068, -inf
        %1078 = vmax.xlane.f32.xlu0 %v1077
        %v1079 = vpop.xlane.xlu0 %1078
        %v1080 = vsel %vm1070, %v1069, -inf
        %1081 = vmax.xlane.f32.xlu0 %v1080
        %v1082 = vpop.xlane.xlu0 %1081
        %v1083 = vsub.f32 %v1066, %v1073
        %v1084 = vsub.f32 %v1067, %v1076
        %v1085 = vsub.f32 %v1068, %v1079
        %v1086 = vsub.f32 %v1069, %v1082
        %v1087 = vmul.f32 %v1083, 1.442695
        %v1088 = vpow.pop %v1087
        %v1089 = vmul.f32 %v1084, 1.442695
        %v1090 = vpow.pop %v1089
        %v1091 = vmul.f32 %v1085, 1.442695
        %v1092 = vpow.pop %v1091
        %v1093 = vmul.f32 %v1086, 1.442695
        %v1094 = vpow.pop %v1093
        %v1095 = vsel %vm1070, %v1088, 0.0
        %1096 = vadd.xlane.f32.xlu0 %v1095
        %v1097 = vpop.xlane.xlu0 %1096
        %v1098 = vsel %vm1070, %v1090, 0.0
        %1099 = vadd.xlane.f32.xlu0 %v1098
        %v1100 = vpop.xlane.xlu0 %1099
        %v1101 = vsel %vm1070, %v1092, 0.0
        %1102 = vadd.xlane.f32.xlu0 %v1101
        %v1103 = vpop.xlane.xlu0 %1102
        %v1104 = vsel %vm1070, %v1094, 0.0
        %1105 = vadd.xlane.f32.xlu0 %v1104
        %v1106 = vpop.xlane.xlu0 %1105
        %v1107 = vrcp.pop %v1097
        %v1108 = vrcp.pop %v1100
        %v1109 = vrcp.pop %v1103
        %v1110 = vrcp.pop %v1106
        %v1111 = vmul.f32 %v1088, %v1107
        %v1112 = vmul.f32 %v1090, %v1108
        %v1113 = vmul.f32 %v1092, %v1109
        %v1114 = vmul.f32 %v1094, %v1110
        %v1115 = vpack.c.bf16 %v1111, %v1111
        %v1116 = vpack.c.bf16 %v1112, %v1112
        %v1117 = vpack.c.bf16 %v1113, %v1113
        %v1118 = vpack.c.bf16 %v1114, %v1114
        %v1120 = vsel %vm1070, %v1115, 0
        %vm1122 = vcmask 1043456
        %v1124 = vsel %vm1122, %v870, 0
        %1126 = vmatprep.subr.bf16.mxu0 0
        %1127 = vmatpush1.bf16.msra.mxu0 %v1124
        %1128 = vmatprep.subr.bf16.mxu0 0
        %1129 = vmatpush1.bf16.msra.mxu0 0
        %1130 = vmatprep.subr.bf16.mxu0 0
        %1131 = vmatpush1.bf16.msra.mxu0 0
        %1132 = vmatprep.subr.bf16.mxu0 0
        %1133 = vmatpush1.bf16.msra.mxu0 0
        %1134 = vmatprep.subr.bf16.mxu0 0
        %1135 = vmatpush1.bf16.msra.mxu0 0
        %1136 = vmatprep.subr.bf16.mxu0 0
        %1137 = vmatpush1.bf16.msra.mxu0 0
        %1138 = vmatprep.subr.bf16.mxu0 0
        %1139 = vmatpush1.bf16.msra.mxu0 0
        %1140 = vmatprep.subr.bf16.mxu0 0
        %1141 = vmatpush1.bf16.msra.mxu0 0
        %1142 = vmatprep.subr.bf16.mxu0 0
        %1143 = vmatpush1.bf16.msra.mxu0 0
        %1144 = vmatprep.subr.bf16.mxu0 0
        %1145 = vmatpush1.bf16.msra.mxu0 0
        %1146 = vmatprep.subr.bf16.mxu0 0
        %1147 = vmatpush1.bf16.msra.mxu0 0
        %1148 = vmatprep.subr.bf16.mxu0 0
        %1149 = vmatpush1.bf16.msra.mxu0 0
        %1150 = vmatprep.subr.bf16.mxu0 0
        %1151 = vmatpush1.bf16.msra.mxu0 0
        %1152 = vmatprep.subr.bf16.mxu0 0
        %1153 = vmatpush1.bf16.msra.mxu0 0
        %1154 = vmatprep.subr.bf16.mxu0 0
        %1155 = vmatpush1.bf16.msra.mxu0 0
        %1156 = vmatprep.subr.bf16.mxu0 0
        %1157 = vmatpush1.bf16.msra.mxu0 0
        %1158 = vmatprep.mubr.bf16.mxu0 0
        %1159 = vmatmul.mubr.bf16.gmra.mrb[0].mxu0 %v1120
        %v1160 = vpop.f32.mrb[0].mxu0
        %v1161 = vadd.f32 0.0, %v1160
        %v1162 = vpop.f32.mrb[0].mxu0
        %v1163 = vpop.f32.mrb[0].mxu0
        %v1164 = vpop.f32.mrb[0].mxu0
        %1165 = vdwg.mxu0
        %v1167 = vsel %vm1070, %v1116, 0
        %v1170 = vsel %vm1122, %v871, 0
        %1172 = vmatprep.subr.bf16.mxu0 0
        %1173 = vmatpush1.bf16.msra.mxu0 %v1170
        %1174 = vmatprep.subr.bf16.mxu0 0
        %1175 = vmatpush1.bf16.msra.mxu0 0
        %1176 = vmatprep.subr.bf16.mxu0 0
        %1177 = vmatpush1.bf16.msra.mxu0 0
        %1178 = vmatprep.subr.bf16.mxu0 0
        %1179 = vmatpush1.bf16.msra.mxu0 0
        %1180 = vmatprep.subr.bf16.mxu0 0
        %1181 = vmatpush1.bf16.msra.mxu0 0
        %1182 = vmatprep.subr.bf16.mxu0 0
        %1183 = vmatpush1.bf16.msra.mxu0 0
        %1184 = vmatprep.subr.bf16.mxu0 0
        %1185 = vmatpush1.bf16.msra.mxu0 0
        %1186 = vmatprep.subr.bf16.mxu0 0
        %1187 = vmatpush1.bf16.msra.mxu0 0
        %1188 = vmatprep.subr.bf16.mxu0 0
        %1189 = vmatpush1.bf16.msra.mxu0 0
        %1190 = vmatprep.subr.bf16.mxu0 0
        %1191 = vmatpush1.bf16.msra.mxu0 0
        %1192 = vmatprep.subr.bf16.mxu0 0
        %1193 = vmatpush1.bf16.msra.mxu0 0
        %1194 = vmatprep.subr.bf16.mxu0 0
        %1195 = vmatpush1.bf16.msra.mxu0 0
        %1196 = vmatprep.subr.bf16.mxu0 0
        %1197 = vmatpush1.bf16.msra.mxu0 0
        %1198 = vmatprep.subr.bf16.mxu0 0
        %1199 = vmatpush1.bf16.msra.mxu0 0
        %1200 = vmatprep.subr.bf16.mxu0 0
        %1201 = vmatpush1.bf16.msra.mxu0 0
        %1202 = vmatprep.subr.bf16.mxu0 0
        %1203 = vmatpush1.bf16.msra.mxu0 0
        %1204 = vmatprep.mubr.bf16.mxu0 0
        %1205 = vmatmul.mubr.bf16.gmra.mrb[0].mxu0 %v1167
        %v1206 = vpop.f32.mrb[0].mxu0
        %v1207 = vadd.f32 0.0, %v1206
        %v1208 = vpop.f32.mrb[0].mxu0
        %v1209 = vpop.f32.mrb[0].mxu0
        %v1210 = vpop.f32.mrb[0].mxu0
        %1211 = vdwg.mxu0
        %v1213 = vsel %vm1070, %v1117, 0
        %v1216 = vsel %vm1122, %v872, 0
        %1218 = vmatprep.subr.bf16.mxu0 0
        %1219 = vmatpush1.bf16.msra.mxu0 %v1216
        %1220 = vmatprep.subr.bf16.mxu0 0
        %1221 = vmatpush1.bf16.msra.mxu0 0
        %1222 = vmatprep.subr.bf16.mxu0 0
        %1223 = vmatpush1.bf16.msra.mxu0 0
        %1224 = vmatprep.subr.bf16.mxu0 0
        %1225 = vmatpush1.bf16.msra.mxu0 0
        %1226 = vmatprep.subr.bf16.mxu0 0
        %1227 = vmatpush1.bf16.msra.mxu0 0
        %1228 = vmatprep.subr.bf16.mxu0 0
        %1229 = vmatpush1.bf16.msra.mxu0 0
        %1230 = vmatprep.subr.bf16.mxu0 0
        %1231 = vmatpush1.bf16.msra.mxu0 0
        %1232 = vmatprep.subr.bf16.mxu0 0
        %1233 = vmatpush1.bf16.msra.mxu0 0
        %1234 = vmatprep.subr.bf16.mxu0 0
        %1235 = vmatpush1.bf16.msra.mxu0 0
        %1236 = vmatprep.subr.bf16.mxu0 0
        %1237 = vmatpush1.bf16.msra.mxu0 0
        %1238 = vmatprep.subr.bf16.mxu0 0
        %1239 = vmatpush1.bf16.msra.mxu0 0
        %1240 = vmatprep.subr.bf16.mxu0 0
        %1241 = vmatpush1.bf16.msra.mxu0 0
        %1242 = vmatprep.subr.bf16.mxu0 0
        %1243 = vmatpush1.bf16.msra.mxu0 0
        %1244 = vmatprep.subr.bf16.mxu0 0
        %1245 = vmatpush1.bf16.msra.mxu0 0
        %1246 = vmatprep.subr.bf16.mxu0 0
        %1247 = vmatpush1.bf16.msra.mxu0 0
        %1248 = vmatprep.subr.bf16.mxu0 0
        %1249 = vmatpush1.bf16.msra.mxu0 0
        %1250 = vmatprep.mubr.bf16.mxu0 0
        %1251 = vmatmul.mubr.bf16.gmra.mrb[0].mxu0 %v1213
        %v1252 = vpop.f32.mrb[0].mxu0
        %v1253 = vadd.f32 0.0, %v1252
        %v1254 = vpop.f32.mrb[0].mxu0
        %v1255 = vpop.f32.mrb[0].mxu0
        %v1256 = vpop.f32.mrb[0].mxu0
        %1257 = vdwg.mxu0
        %v1259 = vsel %vm1070, %v1118, 0
        %v1262 = vsel %vm1122, %v873, 0
        %1264 = vmatprep.subr.bf16.mxu0 0
        %1265 = vmatpush1.bf16.msra.mxu0 %v1262
        %1266 = vmatprep.subr.bf16.mxu0 0
        %1267 = vmatpush1.bf16.msra.mxu0 0
        %1268 = vmatprep.subr.bf16.mxu0 0
        %1269 = vmatpush1.bf16.msra.mxu0 0
        %1270 = vmatprep.subr.bf16.mxu0 0
        %1271 = vmatpush1.bf16.msra.mxu0 0
        %1272 = vmatprep.subr.bf16.mxu0 0
        %1273 = vmatpush1.bf16.msra.mxu0 0
        %1274 = vmatprep.subr.bf16.mxu0 0
        %1275 = vmatpush1.bf16.msra.mxu0 0
        %1276 = vmatprep.subr.bf16.mxu0 0
        %1277 = vmatpush1.bf16.msra.mxu0 0
        %1278 = vmatprep.subr.bf16.mxu0 0
        %1279 = vmatpush1.bf16.msra.mxu0 0
        %1280 = vmatprep.subr.bf16.mxu0 0
        %1281 = vmatpush1.bf16.msra.mxu0 0
        %1282 = vmatprep.subr.bf16.mxu0 0
        %1283 = vmatpush1.bf16.msra.mxu0 0
        %1284 = vmatprep.subr.bf16.mxu0 0
        %1285 = vmatpush1.bf16.msra.mxu0 0
        %1286 = vmatprep.subr.bf16.mxu0 0
        %1287 = vmatpush1.bf16.msra.mxu0 0
        %1288 = vmatprep.subr.bf16.mxu0 0
        %1289 = vmatpush1.bf16.msra.mxu0 0
        %1290 = vmatprep.subr.bf16.mxu0 0
        %1291 = vmatpush1.bf16.msra.mxu0 0
        %1292 = vmatprep.subr.bf16.mxu0 0
        %1293 = vmatpush1.bf16.msra.mxu0 0
        %1294 = vmatprep.subr.bf16.mxu0 0
        %1295 = vmatpush1.bf16.msra.mxu0 0
        %1296 = vmatprep.mubr.bf16.mxu0 0
        %1297 = vmatmul.mubr.bf16.gmra.mrb[0].mxu0 %v1259
        %v1298 = vpop.f32.mrb[0].mxu0
        %v1299 = vadd.f32 0.0, %v1298
        %v1300 = vpop.f32.mrb[0].mxu0
        %v1301 = vpop.f32.mrb[0].mxu0
        %v1302 = vpop.f32.mrb[0].mxu0
        %1303 = vdwg.mxu0
        %v1304 = vcombine.low %v1161, %v1253
        %v1305 = vcombine.high %v1161, %v1253
        %v1307 = vunpack.c.l.s4 1983009808
        %v1308 = vunpack.c.0.s8 %v1307
        %v1309 = vlaneseq
        %v1310 = vshrl.u32 %v1309, 7
        %v1311 = vsub.s32 %v1308, %v1310
        %v1312 = vrot.slane %v1304, %v1311
        %v1314 = vunpack.c.l.s4 1983009808
        %v1315 = vunpack.c.0.s8 %v1314
        %v1316 = vlaneseq
        %v1317 = vshrl.u32 %v1316, 7
        %v1318 = vsub.s32 %v1315, %v1317
        %v1319 = vrot.slane %v1305, %v1318
        %v1320 = vcombine.low %v1207, %v1299
        %v1321 = vcombine.high %v1207, %v1299
        %v1323 = vunpack.c.l.s4 1983009808
        %v1324 = vunpack.c.0.s8 %v1323
        %v1325 = vlaneseq
        %v1326 = vshrl.u32 %v1325, 7
        %v1327 = vsub.s32 %v1324, %v1326
        %v1328 = vrot.slane %v1320, %v1327
        %v1330 = vunpack.c.l.s4 1983009808
        %v1331 = vunpack.c.0.s8 %v1330
        %v1332 = vlaneseq
        %v1333 = vshrl.u32 %v1332, 7
        %v1334 = vsub.s32 %v1331, %v1333
        %v1335 = vrot.slane %v1321, %v1334
        %v1336 = vcombine.low %v1312, %v1328
        %v1337 = vcombine.high %v1312, %v1328
        %v1339 = vunpack.c.l.s4 1934713408
        %v1340 = vunpack.c.0.s8 %v1339
        %v1341 = vlaneseq
        %v1342 = vshrl.u32 %v1341, 7
        %v1343 = vsub.s32 %v1340, %v1342
        %v1344 = vrot.slane %v1336, %v1343
        %v1346 = vunpack.c.l.s4 1934713408
        %v1347 = vunpack.c.0.s8 %v1346
        %v1348 = vlaneseq
        %v1349 = vshrl.u32 %v1348, 7
        %v1350 = vsub.s32 %v1347, %v1349
        %v1351 = vrot.slane %v1337, %v1350
        %v1352 = vcombine.low %v1319, %v1335
        %v1353 = vcombine.high %v1319, %v1335
        %v1355 = vunpack.c.l.s4 1934713408
        %v1356 = vunpack.c.0.s8 %v1355
        %v1357 = vlaneseq
        %v1358 = vshrl.u32 %v1357, 7
        %v1359 = vsub.s32 %v1356, %v1358
        %v1360 = vrot.slane %v1352, %v1359
        %v1362 = vunpack.c.l.s4 1934713408
        %v1363 = vunpack.c.0.s8 %v1362
        %v1364 = vlaneseq
        %v1365 = vshrl.u32 %v1364, 7
        %v1366 = vsub.s32 %v1363, %v1365
        %v1367 = vrot.slane %v1353, %v1366
        %v1368 = vcombine.high %v1344, 0.0
        %v1369 = vcombine.high %v1351, 0.0
        %v1370 = vcombine.high %v1360, 0.0
        %v1371 = vcombine.high %v1367, 0.0
        %v1372 = vcombine.low %v1344, %v1351
        %v1374 = vunpack.c.l.s4 1983009808
        %v1375 = vunpack.c.0.s8 %v1374
        %v1376 = vlaneseq
        %v1377 = vshrl.u32 %v1376, 7
        %v1378 = vsub.s32 %v1375, %v1377
        %v1379 = vrot.slane %v1372, %v1378
        %v1380 = vcombine.low %v1368, %v1369
        %v1382 = vunpack.c.l.s4 1983009808
        %v1383 = vunpack.c.0.s8 %v1382
        %v1384 = vlaneseq
        %v1385 = vshrl.u32 %v1384, 7
        %v1386 = vsub.s32 %v1383, %v1385
        %v1387 = vrot.slane %v1380, %v1386
        %v1388 = vcombine.low %v1360, %v1367
        %v1390 = vunpack.c.l.s4 1983009808
        %v1391 = vunpack.c.0.s8 %v1390
        %v1392 = vlaneseq
        %v1393 = vshrl.u32 %v1392, 7
        %v1394 = vsub.s32 %v1391, %v1393
        %v1395 = vrot.slane %v1388, %v1394
        %v1396 = vcombine.low %v1370, %v1371
        %v1398 = vunpack.c.l.s4 1983009808
        %v1399 = vunpack.c.0.s8 %v1398
        %v1400 = vlaneseq
        %v1401 = vshrl.u32 %v1400, 7
        %v1402 = vsub.s32 %v1399, %v1401
        %v1403 = vrot.slane %v1396, %v1402
        %v1404 = vcombine.low %v1379, %v1387
        %v1405 = vcombine.high %v1379, %v1387
        %v1407 = vunpack.c.l.s4 1934713408
        %v1408 = vunpack.c.0.s8 %v1407
        %v1409 = vlaneseq
        %v1410 = vshrl.u32 %v1409, 7
        %v1411 = vsub.s32 %v1408, %v1410
        %v1412 = vrot.slane %v1404, %v1411
        %v1414 = vunpack.c.l.s4 1934713408
        %v1415 = vunpack.c.0.s8 %v1414
        %v1416 = vlaneseq
        %v1417 = vshrl.u32 %v1416, 7
        %v1418 = vsub.s32 %v1415, %v1417
        %v1419 = vrot.slane %v1405, %v1418
        %v1420 = vcombine.low %v1395, %v1403
        %v1421 = vcombine.high %v1395, %v1403
        %v1423 = vunpack.c.l.s4 1934713408
        %v1424 = vunpack.c.0.s8 %v1423
        %v1425 = vlaneseq
        %v1426 = vshrl.u32 %v1425, 7
        %v1427 = vsub.s32 %v1424, %v1426
        %v1428 = vrot.slane %v1420, %v1427
        %v1430 = vunpack.c.l.s4 1934713408
        %v1431 = vunpack.c.0.s8 %v1430
        %v1432 = vlaneseq
        %v1433 = vshrl.u32 %v1432, 7
        %v1434 = vsub.s32 %v1431, %v1433
        %v1435 = vrot.slane %v1421, %v1434
        %v1436 = vcombine.low %v1412, %v1428
        %v1437 = vcombine.high %v1412, %v1428
        %v1438 = vcombine.low %v1419, %v1435
        %v1439 = vcombine.high %v1419, %v1435
        %1441 = vrot.lane.b32.xlu0 %v1437, 16
        %v1442 = vpop.permute.xlu0 %1441
        %1445 = vrot.lane.b32.xlu0 %v1438, 32
        %v1446 = vpop.permute.xlu0 %1445
        %1449 = vrot.lane.b32.xlu0 %v1439, 48
        %v1450 = vpop.permute.xlu0 %1449
        %v1452 = vsel %vm874, %v1436, %v1442
        %vm1453 = vcmask 261120
        %v1454 = vsel %vm1453, %v1452, %v1446
        %vm1455 = vcmask 392192
        %v1456 = vsel %vm1455, %v1454, %v1450
        %v1457 = vpack.c.bf16 %v1456, %v1456
        %v1458 = vld [vmem:[#allocation7] sm:$0xf]
        %v1459 = vld [vmem:[#allocation7 + $0x4] sm:$0xf]
        %v1460 = vld [vmem:[#allocation7 + $0x8] sm:$0xf]
        %v1461 = vld [vmem:[#allocation7 + $0xc] sm:$0xf]
        %v1462 = vld [vmem:[#allocation7 + $0x10] sm:$0xf]
        %v1463 = vld [vmem:[#allocation7 + $0x14] sm:$0xf]
        %v1464 = vld [vmem:[#allocation7 + $0x18] sm:$0xf]
        %v1465 = vld [vmem:[#allocation7 + $0x1c] sm:$0xf]
        %v1474 = vunpack.c.l.b16 %v1458
        %v1475 = vunpack.c.l.b16 %v1459
        %v1476 = vunpack.c.l.b16 %v1460
        %v1477 = vunpack.c.l.b16 %v1461
        %v1478 = vunpack.c.l.b16 %v1462
        %v1479 = vunpack.c.l.b16 %v1463
        %v1480 = vunpack.c.l.b16 %v1464
        %v1481 = vunpack.c.l.b16 %v1465
        %v1482 = vpack.c.b16 %v1475, %v1474
        %v1483 = vpack.c.b16 %v1477, %v1476
        %v1484 = vpack.c.b16 %v1479, %v1478
        %v1485 = vpack.c.b16 %v1481, %v1480
        %v1491 = vsel %vm298, %v1457, 0
        %1493 = vmatprep.subr.bf16.mxu0 0
        %1494 = vmatpush1.bf16.msra.mxu0 %v1482
        %1495 = vmatprep.subr.bf16.mxu0 0
        %1496 = vmatpush1.bf16.msra.mxu0 %v1483
        %1497 = vmatprep.subr.bf16.mxu0 0
        %1498 = vmatpush1.bf16.msra.mxu0 %v1484
        %1499 = vmatprep.subr.bf16.mxu0 0
        %1500 = vmatpush1.bf16.msra.mxu0 %v1485
        %1501 = vmatprep.subr.bf16.mxu0 0
        %1502 = vmatpush1.bf16.msra.mxu0 0
        %1503 = vmatprep.subr.bf16.mxu0 0
        %1504 = vmatpush1.bf16.msra.mxu0 0
        %1505 = vmatprep.subr.bf16.mxu0 0
        %1506 = vmatpush1.bf16.msra.mxu0 0
        %1507 = vmatprep.subr.bf16.mxu0 0
        %1508 = vmatpush1.bf16.msra.mxu0 0
        %1509 = vmatprep.subr.bf16.mxu0 0
        %1510 = vmatpush1.bf16.msra.mxu0 0
        %1511 = vmatprep.subr.bf16.mxu0 0
        %1512 = vmatpush1.bf16.msra.mxu0 0
        %1513 = vmatprep.subr.bf16.mxu0 0
        %1514 = vmatpush1.bf16.msra.mxu0 0
        %1515 = vmatprep.subr.bf16.mxu0 0
        %1516 = vmatpush1.bf16.msra.mxu0 0
        %1517 = vmatprep.subr.bf16.mxu0 0
        %1518 = vmatpush1.bf16.msra.mxu0 0
        %1519 = vmatprep.subr.bf16.mxu0 0
        %1520 = vmatpush1.bf16.msra.mxu0 0
        %1521 = vmatprep.subr.bf16.mxu0 0
        %1522 = vmatpush1.bf16.msra.mxu0 0
        %1523 = vmatprep.subr.bf16.mxu0 0
        %1524 = vmatpush1.bf16.msra.mxu0 0
        %1525 = vmatprep.mubr.bf16.mxu0 0
        %1526 = vmatmul.mubr.bf16.gmra.mrb[0].mxu0 %v1491
        %v1527 = vpop.f32.mrb[0].mxu0
        %v1528 = vadd.f32 0.0, %v1527
        %v1529 = vpop.f32.mrb[0].mxu0
        %v1530 = vpop.f32.mrb[0].mxu0
        %v1531 = vpop.f32.mrb[0].mxu0
        %1532 = vdwg.mxu0
        %v1533 = vadd.f32 %v297, %v1528
        %v1534 = vld [vmem:[%s5] sm:$0x1]
        %v1536 = vlaneseq
        %v1537 = vshrl.u32 %v1536, 7
        %v1538 = vsub.s32 0, %v1537
        %v1539 = vrot.slane %v1534, %v1538
        %v1541 = vadd.f32 %v1533, %v1539
        %1542 = vst.msk [vmem:[%s295] sm:$0xff] %vm298, %v1541
        %s1543 = sand.u32 %s163, 1
        %s1544 = scalar_lea.sflag [#allocation4], %s1543
        %s1545 = sand.u32 %s163, 1
        %s1546 = smul.addr %s1545, 8
        %s1547 = scalar_lea.vmem [#allocation8], %s1546
        // Predicated region
        $region57: #{tpu_custom_call.1} parent=43 // pred_check
          %p1548 = pneg %p173
        $region58: #{tpu_custom_call.1} parent=43 // pred_check_branch
          %1550 = sbr.rel (%p1548) target = $region60
        $region59: #{tpu_custom_call.1} parent=43 // pred_region
          %s1552 = ssub.s32 128, 128
          %1553 = vsyncadd %s1544, %s1552
          %s1554 = smul.addr %s24, 128
          %s1555 = scalar_lea.hbm %s6, %s1554
          %s1557 = sshll.u32 %s1547, 4
          %s1558 = int_to_ptr.vmem [resolvable:$true] %s1557
          %1560 = dma.vmem_to_hbm [thread:$0]  %s1558, 128, %s1555, %s1544
        $region60: #{tpu_custom_call.1} parent=43 // pred_fallthru
          _
      $region44: #{tpu_custom_call.1} parent=5 // pred_fallthru
        _
      %p1561 = scmp.le.s32.totalorder 2, %s19
      // Predicated region
      $region61: #{tpu_custom_call.1} parent=5 // pred_check
        %p1562 = pneg %p1561
      $region62: #{tpu_custom_call.1} parent=5 // pred_check_branch
        %1564 = sbr.rel (%p1562) target = $region64
      $region63: #{tpu_custom_call.1} parent=5 // pred_region
        %s1565 = ssub.s32 %s19, 2
        // Predicated region
        $region65: #{tpu_custom_call.1} parent=63 // pred_check
          %p1566 = pneg %p179
        $region66: #{tpu_custom_call.1} parent=63 // pred_check_branch
          %1568 = sbr.rel (%p1566) target = $region68
        $region67: #{tpu_custom_call.1} parent=63 // pred_region
          %s1569 = sand.u32 %s164, 1
          %s1570 = scalar_lea.sflag [#allocation4], %s1569
          %s1571 = sand.u32 %s164, 1
          %s1572 = smul.addr %s1571, 8
          %s1573 = scalar_lea.vmem [#allocation8], %s1572
          %1574 = dma.done %s1570, 128
        $region68: #{tpu_custom_call.1} parent=63 // pred_fallthru
          _
      $region64: #{tpu_custom_call.1} parent=5 // pred_fallthru
        _
    $region6: #{tpu_custom_call.1} parent=1 // loop_footer
      %s23 = sadd.s32 1, %s19
    $region7: #{tpu_custom_call.1} parent=1 // loop_footer_branch
      %18 = sbr.rel target = $region3
    $region8: #{tpu_custom_call.1} parent=1 // loop_exit
      _
    %1575 = vsyncpa [#allocation3], 1
    %s1576 = scalar_lea.sflag [#allocation3], 1
    %1577 = vsyncpa %s1576, 1
    %1578 = vsyncpa [#allocation6], 1
    %1579 = vsyncpa [#allocation4], 1
    %s1580 = scalar_lea.sflag [#allocation4], 1
    %1581 = vsyncpa %s1580, 1

</llo_original>
